<compile_context>
chip_gen: v5e
topology: v5e:2x2
jax: 0.10.0
libtpu: 0.0.40
codegen_flags: <defaults>
</compile_context>

<pallas_src>
import functools

import jax
import jax.numpy as jnp
from jax.experimental import pallas as pl
from jax.experimental.pallas import tpu as pltpu


def _round_up(x, m):
    return (x + m - 1) // m * m


def _cdiv(a, b):
    return -(-a // b)


def _chip_config():
    """Per-generation (vmem_budget_bytes, vmem_limit_bytes, num_tensorcores)."""
    kind = ""
    try:
        kind = jax.devices()[0].device_kind.lower()
    except Exception:
        pass
    vmem_cap = None
    try:
        vmem_cap = int(pltpu.get_tpu_info().vmem_capacity_bytes)
    except Exception:
        pass
    small_vmem = vmem_cap is not None and vmem_cap <= 80 * 2 ** 20
    if ("7" in kind) or small_vmem or (not kind and vmem_cap is None):
        # v7x: 64 MiB per TensorCore, 2 TCs.  Also the safe unknown-chip default.
        return 44 * 2 ** 20, 56 * 2 ** 20, 2
    # v5e / v6e (and v4/v5p): 128 MiB VMEM, single TensorCore behind the grid.
    return 88 * 2 ** 20, 100 * 2 ** 20, 1


def _layernorm_epilogue(x_f32, y_f32, gamma, beta, mask, d_real, eps):
    """LayerNorm(x + y) over the real (unpadded) D columns.

    Padded columns of x and y are exactly zero (zero-padded x, W2^T columns,
    b2), so the row sum is already correct; the centered term is masked by a
    precomputed {0,1} row so padding does not pollute the variance."""
    r = x_f32 + y_f32
    inv_d = 1.0 / d_real
    mean = jnp.sum(r, axis=-1, keepdims=True) * inv_d
    cent = (r - mean) * mask
    var = jnp.sum(cent * cent, axis=-1, keepdims=True) * inv_d
    norm = cent * jax.lax.rsqrt(var + eps)          # rsqrt -> EUP slot
    return norm * gamma + beta


def ffn_ln_resident_kernel(x_ref, w1_ref, b1_ref, w2_ref, b2_ref,
                           gamma_ref, beta_ref, mask_ref, o_ref,
                           *, hidden_chunk, d_real, eps, compute_dtype,
                           mm_precision):
    """One row tile with both weight matrices resident in VMEM.

    Hidden dim is walked in static chunks so the live f32 ReLU intermediate is
    bounded by (tm, hidden_chunk) instead of (tm, Hp)."""
    x = x_ref[...]                                   # (tm, Dp) in view dtype
    xc = x.astype(compute_dtype)                     # MXU operand
    tm, dp = x.shape
    hp = w1_ref.shape[1]

    acc = jnp.zeros((tm, dp), jnp.float32)
    for c in range(hp // hidden_chunk):              # static, unrolled
        lo = c * hidden_chunk
        hi = lo + hidden_chunk
        h = jnp.dot(xc, w1_ref[:, lo:hi],
                    preferred_element_type=jnp.float32, precision=mm_precision)
        h = jnp.maximum(h + b1_ref[:, lo:hi], 0.0)   # (tm, chunk) f32
        acc = acc + jnp.dot(h.astype(compute_dtype), w2_ref[lo:hi, :],
                            preferred_element_type=jnp.float32,
                            precision=mm_precision)

    y = acc + b2_ref[...]
    out = _layernorm_epilogue(x.astype(jnp.float32), y, gamma_ref[...],
                              beta_ref[...], mask_ref[...], d_real, eps)
    o_ref[...] = out.astype(o_ref.dtype)


def ffn_ln_streamed_kernel(x_ref, w1_ref, b1_ref, w2_ref, b2_ref,
                           gamma_ref, beta_ref, mask_ref, o_ref, acc_ref,
                           *, d_real, eps, compute_dtype, mm_precision):
    """Fallback: hidden dim streamed over the innermost grid axis with an f32
    VMEM accumulator (used only when the weights do not fit VMEM)."""
    k = pl.program_id(1)
    num_k = pl.num_programs(1)

    @pl.when(k == 0)
    def _zero():
        acc_ref[...] = jnp.zeros_like(acc_ref)

    x = x_ref[...]
    xc = x.astype(compute_dtype)
    h = jnp.dot(xc, w1_ref[...], preferred_element_type=jnp.float32,
                precision=mm_precision)
    h = jnp.maximum(h + b1_ref[...], 0.0)
    acc_ref[...] += jnp.dot(h.astype(compute_dtype), w2_ref[...],
                            preferred_element_type=jnp.float32,
                            precision=mm_precision)

    @pl.when(k == num_k - 1)
    def _epilogue():
        y = acc_ref[...] + b2_ref[...]
        out = _layernorm_epilogue(x.astype(jnp.float32), y, gamma_ref[...],
                                  beta_ref[...], mask_ref[...], d_real, eps)
        o_ref[...] = out.astype(o_ref.dtype)


def prepare_params(params, *, compute_dtype=jnp.bfloat16):
    """One-time weight prep (hoisted out of the per-call path).

    Transposes to (in, out) layout, casts MXU operands to compute_dtype, and
    zero-pads to lane-dense multiples: D -> 128, H -> 256 (full-width on the
    256-wide v6e/v7x MXU, still 128-aligned for v5e)."""
    H, D = params["w1"].shape          # nn.Linear stores (out_features, in_features)
    Dp = _round_up(D, 128)
    Hp = _round_up(H, 256)
    pd, ph = Dp - D, Hp - H
    return {
        "w1_t": jnp.pad(params["w1"].T.astype(compute_dtype), ((0, pd), (0, ph))),
        "w2_t": jnp.pad(params["w2"].T.astype(compute_dtype), ((0, ph), (0, pd))),
        "b1": jnp.pad(params["b1"].astype(jnp.float32), (0, ph)).reshape(1, Hp),
        "b2": jnp.pad(params["b2"].astype(jnp.float32), (0, pd)).reshape(1, Dp),
        "gamma": jnp.pad(params["gamma"].astype(jnp.float32), (0, pd)).reshape(1, Dp),
        "beta": jnp.pad(params["beta"].astype(jnp.float32), (0, pd)).reshape(1, Dp),
        "mask": (jnp.arange(Dp) < D).astype(jnp.float32).reshape(1, Dp),
        "d_real": D,
        "h_real": H,
        "compute_dtype": compute_dtype,
    }


def feed_forward_layer(view, prep, *, row_tile=512, hidden_tile=1024,
                       eps=1e-5, force_streamed=False):
    """view: (B, S, D).  prep: output of prepare_params().  Returns
    LayerNorm(view + Linear2(ReLU(Linear1(view)))) with matmuls on the MXU in
    prep['compute_dtype'] (f32 accumulation); residual / LayerNorm stay f32."""
    B, S, D = view.shape
    assert D == prep["d_real"], "view feature dim does not match prepared params"
    H = prep["h_real"]
    compute_dtype = prep["compute_dtype"]
    w1_t, w2_t = prep["w1_t"], prep["w2_t"]
    Dp, Hp = w1_t.shape
    M = B * S

    cbytes = jnp.dtype(compute_dtype).itemsize
    xbytes = jnp.dtype(view.dtype).itemsize
    SUB = max(8, 32 // cbytes)          # packed sublane multiple: 8 f32 / 16 bf16
    mm_precision = (jax.lax.Precision.HIGHEST
                    if jnp.dtype(compute_dtype) == jnp.dtype(jnp.float32)
                    else jax.lax.Precision.DEFAULT)

    budget, vmem_limit_cap, num_cores = _chip_config()

    # ---- row tile ----------------------------------------------------------
    tm = min(_round_up(row_tile, SUB), _round_up(M, SUB))
    # Only split rows on multi-TensorCore chips (v7x).  On single-TC v5e/v6e
    # the "parallel" grid axis is a serial loop, so halving tm only adds
    # per-step overhead.
    if num_cores > 1 and _cdiv(M, tm) < num_cores and M > num_cores * SUB:
        tm = _round_up(_cdiv(M, num_cores), SUB)

    # ---- hidden chunk: multiple of 256 that always divides Hp --------------
    def pick_th(target):
        if Hp <= target:
            return Hp
        for cand in range(_round_up(target, 256), 255, -256):
            if Hp % cand == 0:
                return cand
        return 256                       # Hp is a multiple of 256 by construction

    th = pick_th(hidden_tile)

    # ---- conservative VMEM models (everything counted double-buffered) -----
    small = 2 * (Hp + 4 * Dp) * 4                      # b1, b2, gamma, beta, mask (f32)

    def resident_vmem(tm_, th_):
        io = 2 * tm_ * Dp * xbytes + 2 * tm_ * Dp * xbytes          # x in + out
        wts = 2 * (Dp * Hp + Hp * Dp) * cbytes                       # full weights
        live = tm_ * th_ * 4 + tm_ * Dp * 4 + tm_ * Dp * cbytes      # h, acc, xc
        return io + wts + small + live

    def streamed_vmem(tm_, th_):
        io = 2 * tm_ * Dp * xbytes + 2 * tm_ * Dp * xbytes
        wts = 2 * (Dp * th_ + th_ * Dp) * cbytes                     # weight chunks
        live = tm_ * th_ * 4 + tm_ * Dp * cbytes
        scratch = tm_ * Dp * 4                                       # f32 accumulator
        return io + wts + small + live + scratch

    # Prefer VMEM-resident weights: with the hidden axis removed from the grid
    # every weight byte is read from HBM exactly once per call instead of once
    # per row tile.
    tm_r, th_r = tm, th
    while resident_vmem(tm_r, th_r) > budget and (th_r > 256 or tm_r > SUB):
        if th_r > 256:
            th_r = pick_th(th_r // 2)
        else:
            tm_r = max(SUB, _round_up(tm_r // 2, SUB))
    use_resident = (not force_streamed) and resident_vmem(tm_r, th_r) <= budget

    if use_resident:
        tm, th = tm_r, th_r
    else:
        while streamed_vmem(tm, th) > budget and (th > 256 or tm > SUB):
            if th > 256:
                th = pick_th(th // 2)
            else:
                tm = max(SUB, _round_up(tm // 2, SUB))

    Mp = _round_up(M, tm)
    num_row_tiles = Mp // tm
    x2d = jnp.pad(view.reshape(M, D), ((0, Mp - M), (0, Dp - D)))
    args = (x2d, w1_t, prep["b1"], w2_t, prep["b2"],
            prep["gamma"], prep["beta"], prep["mask"])

    est = resident_vmem(tm, th) if use_resident else streamed_vmem(tm, th)
    vmem_limit = int(min(vmem_limit_cap, max(32 * 2 ** 20, 2 * est)))

    if use_resident:
        kernel = functools.partial(
            ffn_ln_resident_kernel, hidden_chunk=th, d_real=D, eps=eps,
            compute_dtype=compute_dtype, mm_precision=mm_precision)
        cost = pl.CostEstimate(
            flops=4 * M * D * H,
            transcendentals=M,
            bytes_accessed=int(2 * Mp * Dp * xbytes            # x in + out
                               + 2 * Dp * Hp * cbytes          # weights, read once
                               + (Hp + 4 * Dp) * 4))
        out = pl.pallas_call(
            kernel,
            out_shape=jax.ShapeDtypeStruct((Mp, Dp), view.dtype),
            grid_spec=pltpu.PrefetchScalarGridSpec(
                num_scalar_prefetch=0,
                grid=(num_row_tiles,),
                in_specs=[
                    pl.BlockSpec((tm, Dp), lambda i: (i, 0)),   # x row tile
                    pl.BlockSpec((Dp, Hp), lambda i: (0, 0)),   # W1^T resident
                    pl.BlockSpec((1, Hp), lambda i: (0, 0)),    # b1 resident
                    pl.BlockSpec((Hp, Dp), lambda i: (0, 0)),   # W2^T resident
                    pl.BlockSpec((1, Dp), lambda i: (0, 0)),    # b2
                    pl.BlockSpec((1, Dp), lambda i: (0, 0)),    # gamma
                    pl.BlockSpec((1, Dp), lambda i: (0, 0)),    # beta
                    pl.BlockSpec((1, Dp), lambda i: (0, 0)),    # LN column mask
                ],
                out_specs=pl.BlockSpec((tm, Dp), lambda i: (i, 0)),
            ),
            compiler_params=pltpu.CompilerParams(
                dimension_semantics=("parallel",),
                vmem_limit_bytes=vmem_limit),
            cost_estimate=cost,
        )(*args)
    else:
        num_k = Hp // th
        kernel = functools.partial(
            ffn_ln_streamed_kernel, d_real=D, eps=eps,
            compute_dtype=compute_dtype, mm_precision=mm_precision)
        cost = pl.CostEstimate(
            flops=4 * M * D * H,
            transcendentals=M,
            bytes_accessed=int(2 * Mp * Dp * xbytes
                               + num_row_tiles * 2 * Dp * Hp * cbytes  # re-streamed
                               + (Hp + 4 * Dp) * 4))
        out = pl.pallas_call(
            kernel,
            out_shape=jax.ShapeDtypeStruct((Mp, Dp), view.dtype),
            grid_spec=pltpu.PrefetchScalarGridSpec(
                num_scalar_prefetch=0,
                grid=(num_row_tiles, num_k),
                in_specs=[
                    pl.BlockSpec((tm, Dp), lambda i, k: (i, 0)),   # x row tile
                    pl.BlockSpec((Dp, th), lambda i, k: (0, k)),   # W1^T chunk
                    pl.BlockSpec((1, th), lambda i, k: (0, k)),    # b1 chunk
                    pl.BlockSpec((th, Dp), lambda i, k: (k, 0)),   # W2^T chunk
                    pl.BlockSpec((1, Dp), lambda i, k: (0, 0)),    # b2
                    pl.BlockSpec((1, Dp), lambda i, k: (0, 0)),    # gamma
                    pl.BlockSpec((1, Dp), lambda i, k: (0, 0)),    # beta
                    pl.BlockSpec((1, Dp), lambda i, k: (0, 0)),    # LN column mask
                ],
                out_specs=pl.BlockSpec((tm, Dp), lambda i, k: (i, 0)),
                scratch_shapes=[pltpu.VMEM((tm, Dp), jnp.float32)],
            ),
            compiler_params=pltpu.CompilerParams(
                dimension_semantics=("parallel", "arbitrary"),
                vmem_limit_bytes=vmem_limit),
            cost_estimate=cost,
        )(*args)

    return out[:M, :D].reshape(B, S, D)


def init_params(key, input_channel, hidden_channel):
    """Deterministic synthetic parameters (shapes match the PyTorch module)."""
    k1, k2, k3, k4 = jax.random.split(key, 4)
    scale1 = 1.0 / jnp.sqrt(input_channel)
    scale2 = 1.0 / jnp.sqrt(hidden_channel)
    return {
        # nn.Linear stores weight as (out_features, in_features)
        "w1": jax.random.uniform(k1, (hidden_channel, input_channel),
                                 jnp.float32, -scale1, scale1),
        "b1": jax.random.uniform(k2, (hidden_channel,),
                                 jnp.float32, -scale1, scale1),
        "w2": jax.random.uniform(k3, (input_channel, hidden_channel),
                                 jnp.float32, -scale2, scale2),
        "b2": jax.random.uniform(k4, (input_channel,),
                                 jnp.float32, -scale2, scale2),
        # nn.LayerNorm: weight=1, bias=0
        "gamma": jnp.ones((input_channel,), jnp.float32),
        "beta": jnp.zeros((input_channel,), jnp.float32),
    }


def reference(view, params):
    """Pure-JAX reference (highest matmul precision) for correctness checks."""
    x = view
    h = jnp.maximum(jnp.dot(x, params["w1"].T, precision="highest")
                    + params["b1"], 0.0)
    y = jnp.dot(h, params["w2"].T, precision="highest") + params["b2"]
    r = x + y
    mean = jnp.mean(r, axis=-1, keepdims=True)
    var = jnp.mean((r - mean) ** 2, axis=-1, keepdims=True)
    norm = (r - mean) / jnp.sqrt(var + 1e-5)
    return norm * params["gamma"] + params["beta"]


if __name__ == "__main__":
    B, S, D, H = 2, 8, 32, 64        # batch, seq, input_channel, hidden_channel

    key = jax.random.PRNGKey(0)
    k_x, k_p = jax.random.split(key)
    view = jax.random.normal(k_x, (B, S, D), jnp.float32)
    params = init_params(k_p, D, H)

    ref = reference(view, params)

    # f32 MXU path, resident-weight kernel: must match the reference tightly.
    prep_f32 = prepare_params(params, compute_dtype=jnp.float32)
    out_f32 = jax.block_until_ready(feed_forward_layer(view, prep_f32))
    assert out_f32.shape == (B, S, D)
    assert jnp.allclose(out_f32, ref, atol=2e-3, rtol=2e-3), "f32 mismatch"

    # Streamed-weight fallback path (forced): same math, same tolerance.
    out_str = jax.block_until_ready(
        feed_forward_layer(view, prep_f32, force_streamed=True))
    assert jnp.allclose(out_str, ref, atol=2e-3, rtol=2e-3), "streamed mismatch"

    # bf16 MXU path (default deployment config): loose sanity check.
    prep_bf16 = prepare_params(params, compute_dtype=jnp.bfloat16)
    out_bf16 = jax.block_until_ready(feed_forward_layer(view, prep_bf16))
    assert out_bf16.shape == (B, S, D)
    assert float(jnp.max(jnp.abs(out_bf16 - ref))) < 1e-1, "bf16 mismatch"

    print("KERNEL_OK")
</pallas_src>

<mosaic_0001>
module attributes {stable_mosaic.version = 11 : i64} {
  func.func @ffn_ln_resident_kernel(%arg0: i32, %arg1: memref<16x128xf32, #tpu.memory_space<vmem>>, %arg2: memref<128x256xf32, #tpu.memory_space<vmem>>, %arg3: memref<1x256xf32, #tpu.memory_space<vmem>>, %arg4: memref<256x128xf32, #tpu.memory_space<vmem>>, %arg5: memref<1x128xf32, #tpu.memory_space<vmem>>, %arg6: memref<1x128xf32, #tpu.memory_space<vmem>>, %arg7: memref<1x128xf32, #tpu.memory_space<vmem>>, %arg8: memref<1x128xf32, #tpu.memory_space<vmem>>, %arg9: memref<16x128xf32, #tpu.memory_space<vmem>>) attributes {dimension_semantics = [#tpu.dimension_semantics<parallel>], iteration_bounds = array<i64: 1>, scalar_prefetch = 0 : i64, scratch_operands = 0 : i64, tpu.core_type = #tpu.core_type<tc>, window_params = [{transform_indices = @transform_0, window_bounds = array<i64: 16, 128>}, {pipeline_mode = #tpu.pipeline_mode<synchronous>, transform_indices = @transform_1, window_bounds = array<i64: 128, 256>}, {pipeline_mode = #tpu.pipeline_mode<synchronous>, transform_indices = @transform_2, window_bounds = array<i64: 1, 256>}, {pipeline_mode = #tpu.pipeline_mode<synchronous>, transform_indices = @transform_3, window_bounds = array<i64: 256, 128>}, {pipeline_mode = #tpu.pipeline_mode<synchronous>, transform_indices = @transform_4, window_bounds = array<i64: 1, 128>}, {pipeline_mode = #tpu.pipeline_mode<synchronous>, transform_indices = @transform_5, window_bounds = array<i64: 1, 128>}, {pipeline_mode = #tpu.pipeline_mode<synchronous>, transform_indices = @transform_6, window_bounds = array<i64: 1, 128>}, {pipeline_mode = #tpu.pipeline_mode<synchronous>, transform_indices = @transform_7, window_bounds = array<i64: 1, 128>}, {transform_indices = @transform_8, window_bounds = array<i64: 16, 128>}]} {
    %c0 = arith.constant 0 : index
    %c0_0 = arith.constant 0 : index
    %0 = vector.load %arg1[%c0, %c0_0] : memref<16x128xf32, #tpu.memory_space<vmem>>, vector<16x128xf32>
    %cst = arith.constant 0.000000e+00 : f32
    %1 = vector.broadcast %cst : f32 to vector<16x128xf32>
    %c0_1 = arith.constant 0 : index
    %c0_2 = arith.constant 0 : index
    %2 = vector.load %arg2[%c0_1, %c0_2] : memref<128x256xf32, #tpu.memory_space<vmem>>, vector<128x256xf32>
    %cst_3 = arith.constant dense<0.000000e+00> : vector<16x256xf32>
    %3 = tpu.matmul %0, %2, %cst_3 {dimension_numbers = #tpu.dot_dimension_numbers<[1], [0], [0], [1], [0, 0, 1, 1], [], []>, precision = #tpu.contract_precision<fp32>} : vector<16x128xf32>, vector<128x256xf32>, vector<16x256xf32> -> vector<16x256xf32>
    %c0_4 = arith.constant 0 : index
    %c0_5 = arith.constant 0 : index
    %4 = vector.load %arg3[%c0_4, %c0_5] : memref<1x256xf32, #tpu.memory_space<vmem>>, vector<1x256xf32>
    %5 = vector.broadcast %4 : vector<1x256xf32> to vector<16x256xf32>
    %6 = arith.addf %3, %5 : vector<16x256xf32>
    %cst_6 = arith.constant 0.000000e+00 : f32
    %7 = vector.broadcast %cst_6 : f32 to vector<16x256xf32>
    %8 = arith.maximumf %6, %7 : vector<16x256xf32>
    %c0_7 = arith.constant 0 : index
    %c0_8 = arith.constant 0 : index
    %9 = vector.load %arg4[%c0_7, %c0_8] : memref<256x128xf32, #tpu.memory_space<vmem>>, vector<256x128xf32>
    %cst_9 = arith.constant dense<0.000000e+00> : vector<16x128xf32>
    %10 = tpu.matmul %8, %9, %cst_9 {dimension_numbers = #tpu.dot_dimension_numbers<[1], [0], [0], [1], [0, 0, 1, 1], [], []>, precision = #tpu.contract_precision<fp32>} : vector<16x256xf32>, vector<256x128xf32>, vector<16x128xf32> -> vector<16x128xf32>
    %11 = arith.addf %1, %10 : vector<16x128xf32>
    %c0_10 = arith.constant 0 : index
    %c0_11 = arith.constant 0 : index
    %12 = vector.load %arg5[%c0_10, %c0_11] : memref<1x128xf32, #tpu.memory_space<vmem>>, vector<1x128xf32>
    %13 = vector.broadcast %12 : vector<1x128xf32> to vector<16x128xf32>
    %14 = arith.addf %11, %13 : vector<16x128xf32>
    %c0_12 = arith.constant 0 : index
    %c0_13 = arith.constant 0 : index
    %15 = vector.load %arg6[%c0_12, %c0_13] : memref<1x128xf32, #tpu.memory_space<vmem>>, vector<1x128xf32>
    %c0_14 = arith.constant 0 : index
    %c0_15 = arith.constant 0 : index
    %16 = vector.load %arg7[%c0_14, %c0_15] : memref<1x128xf32, #tpu.memory_space<vmem>>, vector<1x128xf32>
    %c0_16 = arith.constant 0 : index
    %c0_17 = arith.constant 0 : index
    %17 = vector.load %arg8[%c0_16, %c0_17] : memref<1x128xf32, #tpu.memory_space<vmem>>, vector<1x128xf32>
    %18 = arith.addf %0, %14 : vector<16x128xf32>
    %cst_18 = arith.constant dense<0.000000e+00> : vector<16xf32>
    %19 = vector.multi_reduction <add>, %18, %cst_18 [1] : vector<16x128xf32> to vector<16xf32>
    %20 = vector.shape_cast %19 : vector<16xf32> to vector<16x1xf32>
    %cst_19 = arith.constant 3.125000e-02 : f32
    %21 = vector.broadcast %cst_19 : f32 to vector<16x1xf32>
    %22 = arith.mulf %20, %21 : vector<16x1xf32>
    %23 = vector.broadcast %22 : vector<16x1xf32> to vector<16x128xf32>
    %24 = arith.subf %18, %23 : vector<16x128xf32>
    %25 = vector.broadcast %17 : vector<1x128xf32> to vector<16x128xf32>
    %26 = arith.mulf %24, %25 : vector<16x128xf32>
    %27 = arith.mulf %26, %26 : vector<16x128xf32>
    %cst_20 = arith.constant dense<0.000000e+00> : vector<16xf32>
    %28 = vector.multi_reduction <add>, %27, %cst_20 [1] : vector<16x128xf32> to vector<16xf32>
    %29 = vector.shape_cast %28 : vector<16xf32> to vector<16x1xf32>
    %cst_21 = arith.constant 3.125000e-02 : f32
    %30 = vector.broadcast %cst_21 : f32 to vector<16x1xf32>
    %31 = arith.mulf %29, %30 : vector<16x1xf32>
    %cst_22 = arith.constant 9.99999974E-6 : f32
    %32 = vector.broadcast %cst_22 : f32 to vector<16x1xf32>
    %33 = arith.addf %31, %32 : vector<16x1xf32>
    %34 = math.rsqrt %33 : vector<16x1xf32>
    %35 = vector.broadcast %34 : vector<16x1xf32> to vector<16x128xf32>
    %36 = arith.mulf %26, %35 : vector<16x128xf32>
    %37 = vector.broadcast %15 : vector<1x128xf32> to vector<16x128xf32>
    %38 = arith.mulf %36, %37 : vector<16x128xf32>
    %39 = vector.broadcast %16 : vector<1x128xf32> to vector<16x128xf32>
    %40 = arith.addf %38, %39 : vector<16x128xf32>
    %c0_23 = arith.constant 0 : index
    %c0_24 = arith.constant 0 : index
    %41 = vector.load %arg9[%c0_23, %c0_24] : memref<16x128xf32, #tpu.memory_space<vmem>>, vector<16x128xf32>
    tpu.vector_store %arg9[%c0_23, %c0_24], %40 {strides = array<i32>} : memref<16x128xf32, #tpu.memory_space<vmem>>, vector<16x128xf32>,
    return
  }
  func.func @transform_0(%arg0: i32) -> (i32, i32) {
    %c0_i32 = arith.constant 0 : i32
    %c0_i32_0 = arith.constant 0 : i32
    return %arg0, %c0_i32 : i32, i32
  }
  func.func @transform_1(%arg0: i32) -> (i32, i32) {
    %c0_i32 = arith.constant 0 : i32
    %c0_i32_0 = arith.constant 0 : i32
    %c0_i32_1 = arith.constant 0 : i32
    return %c0_i32, %c0_i32_0 : i32, i32
  }
  func.func @transform_2(%arg0: i32) -> (i32, i32) {
    %c0_i32 = arith.constant 0 : i32
    %c0_i32_0 = arith.constant 0 : i32
    %c0_i32_1 = arith.constant 0 : i32
    return %c0_i32, %c0_i32_0 : i32, i32
  }
  func.func @transform_3(%arg0: i32) -> (i32, i32) {
    %c0_i32 = arith.constant 0 : i32
    %c0_i32_0 = arith.constant 0 : i32
    %c0_i32_1 = arith.constant 0 : i32
    return %c0_i32, %c0_i32_0 : i32, i32
  }
  func.func @transform_4(%arg0: i32) -> (i32, i32) {
    %c0_i32 = arith.constant 0 : i32
    %c0_i32_0 = arith.constant 0 : i32
    %c0_i32_1 = arith.constant 0 : i32
    return %c0_i32, %c0_i32_0 : i32, i32
  }
  func.func @transform_5(%arg0: i32) -> (i32, i32) {
    %c0_i32 = arith.constant 0 : i32
    %c0_i32_0 = arith.constant 0 : i32
    %c0_i32_1 = arith.constant 0 : i32
    return %c0_i32, %c0_i32_0 : i32, i32
  }
  func.func @transform_6(%arg0: i32) -> (i32, i32) {
    %c0_i32 = arith.constant 0 : i32
    %c0_i32_0 = arith.constant 0 : i32
    %c0_i32_1 = arith.constant 0 : i32
    return %c0_i32, %c0_i32_0 : i32, i32
  }
  func.func @transform_7(%arg0: i32) -> (i32, i32) {
    %c0_i32 = arith.constant 0 : i32
    %c0_i32_0 = arith.constant 0 : i32
    %c0_i32_1 = arith.constant 0 : i32
    return %c0_i32, %c0_i32_0 : i32, i32
  }
  func.func @transform_8(%arg0: i32) -> (i32, i32) {
    %c0_i32 = arith.constant 0 : i32
    %c0_i32_0 = arith.constant 0 : i32
    return %arg0, %c0_i32 : i32, i32
  }
}

</mosaic_0001>

<llo_original>
// kernel: tpu_custom_call.1
$region0: #{tpu_custom_call.1}
  #allocation0 [shape = 'u32[]', space=smem, size = 0x4, offset = 0x4, fixed_abs, tag = 'smem constant byte address 0x4 - core index']
  #allocation1 [shape = 'u32[72,128]{1,0:T(1,128)}', space=vmem, size = 0x9000, scoped, tag = 'internal scratch']
  %s0 = inlined_call_operand.hbm [shape: f32[16,128], index: 0, kind: input, shape index: {}]
  %s1 = inlined_call_operand.hbm [shape: f32[128,256], index: 1, kind: input, shape index: {}]
  %s2 = inlined_call_operand.hbm [shape: f32[1,256], index: 2, kind: input, shape index: {}]
  %s3 = inlined_call_operand.hbm [shape: f32[256,128], index: 3, kind: input, shape index: {}]
  %s4 = inlined_call_operand.vmem [shape: f32[1,128], index: 4, kind: input, shape index: {}]
  %s5 = inlined_call_operand.vmem [shape: f32[1,128], index: 5, kind: input, shape index: {}]
  %s6 = inlined_call_operand.vmem [shape: f32[1,128], index: 6, kind: input, shape index: {}]
  %s7 = inlined_call_operand.vmem [shape: f32[1,128], index: 7, kind: input, shape index: {}]
  %s8 = inlined_call_operand.hbm [shape: f32[16,128], index: 8, kind: output, shape index: {}]
  %s9 = sld [smem:[#allocation0]]
  $region58: #{tpu_custom_call.1} parent=0
    _
  %s11 = ssub.s32 1, %s9
  %s12 = scalar_select 0, %s11, %s9
  $region1: #{tpu_custom_call.1} parent=0
    #allocation2 [shape = 'u8[8192]{0}', space=vmem, size = 0x2000, scoped, tag = 'input window, operand 0, single buffered']
    #allocation3 [shape = 's32[1]{0}', space=sflag, size = 0x4, scoped, tag = 'scoped memory for tpu_custom_call.1']
    #allocation4 [shape = 's32[1]{0}', space=sflag, size = 0x4, scoped, tag = 'scoped memory for tpu_custom_call.1']
    #allocation5 [shape = 'u8[131072]{0}', space=vmem, size = 0x20000, scoped, tag = 'input window, operand 1, single buffered']
    #allocation6 [shape = 's32[1]{0}', space=sflag, size = 0x4, scoped, tag = 'scoped memory for tpu_custom_call.1']
    #allocation7 [shape = 'u8[1024]{0}', space=vmem, size = 0x400, scoped, tag = 'input window, operand 2, single buffered']
    #allocation8 [shape = 'u8[131072]{0}', space=vmem, size = 0x20000, scoped, tag = 'input window, operand 3, single buffered']
    #allocation9 [shape = 's32[1]{0}', space=sflag, size = 0x4, scoped, tag = 'scoped memory for tpu_custom_call.1']
    #allocation10 [shape = 'u8[8192]{0}', space=vmem, size = 0x2000, scoped, tag = 'output window, operand 0, single buffered']
    %13 = vsyncpa [#allocation3], 0
    %14 = vsyncpa [#allocation6], 0
    %15 = vsyncpa [#allocation9], 0
    %16 = vsyncpa [#allocation4], 0
    // Predicated region
    $region2: #{tpu_custom_call.1} parent=1 // pred_check
      _
    $region3: #{tpu_custom_call.1} parent=1 // pred_check_branch
      %18 = sbr.rel (0) target = $region5
    $region4: #{tpu_custom_call.1} parent=1 // pred_region
      %20 = vsyncadd [#allocation3], 0
      %s21 = sshll.u32 %s0, 4
      %s22 = int_to_ptr.hbm [resolvable:$true] %s21
      %s23 = sshll.u32 [#allocation2], 4
      %s24 = int_to_ptr.vmem [resolvable:$true] %s23
      %29 = dma.hbm_to_vmem [thread:$0]  %s22, 256, %s24, [#allocation3], 128, 128, 8
    $region5: #{tpu_custom_call.1} parent=1 // pred_fallthru
      _
    // Predicated region
    $region6: #{tpu_custom_call.1} parent=1 // pred_check
      _
    $region7: #{tpu_custom_call.1} parent=1 // pred_check_branch
      %31 = sbr.rel (0) target = $region9
    $region8: #{tpu_custom_call.1} parent=1 // pred_region
      %33 = vsyncadd [#allocation6], 0
      %s34 = sshll.u32 %s1, 4
      %s35 = int_to_ptr.hbm [resolvable:$true] %s34
      %s36 = sshll.u32 [#allocation5], 4
      %s37 = int_to_ptr.vmem [resolvable:$true] %s36
      %42 = dma.hbm_to_vmem [thread:$0]  %s35, 4096, %s37, [#allocation6], 256, 256, 16
    $region9: #{tpu_custom_call.1} parent=1 // pred_fallthru
      _
    // Predicated region
    $region10: #{tpu_custom_call.1} parent=1 // pred_check
      _
    $region11: #{tpu_custom_call.1} parent=1 // pred_check_branch
      %44 = sbr.rel (0) target = $region13
    $region12: #{tpu_custom_call.1} parent=1 // pred_region
      %46 = vsyncadd [#allocation6], 0
      %s48 = sshll.u32 %s2, 4
      %s49 = int_to_ptr.hbm [resolvable:$true] %s48
      %s50 = sshll.u32 [#allocation7], 4
      %s51 = int_to_ptr.vmem [resolvable:$true] %s50
      %53 = dma.hbm_to_vmem [thread:$0]  %s49, 32, %s51, [#allocation6]
    $region13: #{tpu_custom_call.1} parent=1 // pred_fallthru
      _
    // Predicated region
    $region14: #{tpu_custom_call.1} parent=1 // pred_check
      _
    $region15: #{tpu_custom_call.1} parent=1 // pred_check_branch
      %55 = sbr.rel (0) target = $region17
    $region16: #{tpu_custom_call.1} parent=1 // pred_region
      %57 = vsyncadd [#allocation9], 0
      %s58 = sshll.u32 %s3, 4
      %s59 = int_to_ptr.hbm [resolvable:$true] %s58
      %s60 = sshll.u32 [#allocation8], 4
      %s61 = int_to_ptr.vmem [resolvable:$true] %s60
      %66 = dma.hbm_to_vmem [thread:$0]  %s59, 4096, %s61, [#allocation9], 128, 128, 8
    $region17: #{tpu_custom_call.1} parent=1 // pred_fallthru
      _
    // Predicated region
    $region18: #{tpu_custom_call.1} parent=1 // pred_check
      _
    $region19: #{tpu_custom_call.1} parent=1 // pred_check_branch
      %68 = sbr.rel (0) target = $region21
    $region20: #{tpu_custom_call.1} parent=1 // pred_region
      _
    $region21: #{tpu_custom_call.1} parent=1 // pred_fallthru
      _
    // Predicated region
    $region22: #{tpu_custom_call.1} parent=1 // pred_check
      _
    $region23: #{tpu_custom_call.1} parent=1 // pred_check_branch
      %70 = sbr.rel (0) target = $region25
    $region24: #{tpu_custom_call.1} parent=1 // pred_region
      _
    $region25: #{tpu_custom_call.1} parent=1 // pred_fallthru
      _
    // Predicated region
    $region26: #{tpu_custom_call.1} parent=1 // pred_check
      _
    $region27: #{tpu_custom_call.1} parent=1 // pred_check_branch
      %72 = sbr.rel (0) target = $region29
    $region28: #{tpu_custom_call.1} parent=1 // pred_region
      _
    $region29: #{tpu_custom_call.1} parent=1 // pred_fallthru
      _
    // Predicated region
    $region30: #{tpu_custom_call.1} parent=1 // pred_check
      _
    $region31: #{tpu_custom_call.1} parent=1 // pred_check_branch
      %74 = sbr.rel (0) target = $region33
    $region32: #{tpu_custom_call.1} parent=1 // pred_region
      _
    $region33: #{tpu_custom_call.1} parent=1 // pred_fallthru
      _
    // Predicated region
    $region34: #{tpu_custom_call.1} parent=1 // pred_check
      _
    $region35: #{tpu_custom_call.1} parent=1 // pred_check_branch
      %76 = sbr.rel (0) target = $region37
    $region36: #{tpu_custom_call.1} parent=1 // pred_region
      %78 = dma.done [#allocation3], 256
    $region37: #{tpu_custom_call.1} parent=1 // pred_fallthru
      _
    // Predicated region
    $region38: #{tpu_custom_call.1} parent=1 // pred_check
      _
    $region39: #{tpu_custom_call.1} parent=1 // pred_check_branch
      %80 = sbr.rel (0) target = $region41
    $region40: #{tpu_custom_call.1} parent=1 // pred_region
      %82 = dma.done [#allocation6], 4096
    $region41: #{tpu_custom_call.1} parent=1 // pred_fallthru
      _
    // Predicated region
    $region42: #{tpu_custom_call.1} parent=1 // pred_check
      _
    $region43: #{tpu_custom_call.1} parent=1 // pred_check_branch
      %84 = sbr.rel (0) target = $region45
    $region44: #{tpu_custom_call.1} parent=1 // pred_region
      %86 = dma.done [#allocation6], 32
    $region45: #{tpu_custom_call.1} parent=1 // pred_fallthru
      _
    // Predicated region
    $region46: #{tpu_custom_call.1} parent=1 // pred_check
      _
    $region47: #{tpu_custom_call.1} parent=1 // pred_check_branch
      %88 = sbr.rel (0) target = $region49
    $region48: #{tpu_custom_call.1} parent=1 // pred_region
      %90 = dma.done [#allocation9], 4096
    $region49: #{tpu_custom_call.1} parent=1 // pred_fallthru
      _
    %v91 = vld [vmem:[#allocation2] sm:$0xff]
    %v92 = vld [vmem:[#allocation2 + $0x8] sm:$0xff]
    %v93 = vld [vmem:[#allocation5] sm:$0xff]
    %v94 = vld [vmem:[#allocation5 + $0x8] sm:$0xff]
    %v95 = vld [vmem:[#allocation5 + $0x10] sm:$0xff]
    %v96 = vld [vmem:[#allocation5 + $0x18] sm:$0xff]
    %v97 = vld [vmem:[#allocation5 + $0x20] sm:$0xff]
    %v98 = vld [vmem:[#allocation5 + $0x28] sm:$0xff]
    %v99 = vld [vmem:[#allocation5 + $0x30] sm:$0xff]
    %v100 = vld [vmem:[#allocation5 + $0x38] sm:$0xff]
    %v101 = vld [vmem:[#allocation5 + $0x40] sm:$0xff]
    %v102 = vld [vmem:[#allocation5 + $0x48] sm:$0xff]
    %v103 = vld [vmem:[#allocation5 + $0x50] sm:$0xff]
    %v104 = vld [vmem:[#allocation5 + $0x58] sm:$0xff]
    %v105 = vld [vmem:[#allocation5 + $0x60] sm:$0xff]
    %v106 = vld [vmem:[#allocation5 + $0x68] sm:$0xff]
    %v107 = vld [vmem:[#allocation5 + $0x70] sm:$0xff]
    %v108 = vld [vmem:[#allocation5 + $0x78] sm:$0xff]
    %v109 = vld [vmem:[#allocation5 + $0x80] sm:$0xff]
    %v110 = vld [vmem:[#allocation5 + $0x88] sm:$0xff]
    %v111 = vld [vmem:[#allocation5 + $0x90] sm:$0xff]
    %v112 = vld [vmem:[#allocation5 + $0x98] sm:$0xff]
    %v113 = vld [vmem:[#allocation5 + $0xa0] sm:$0xff]
    %v114 = vld [vmem:[#allocation5 + $0xa8] sm:$0xff]
    %v115 = vld [vmem:[#allocation5 + $0xb0] sm:$0xff]
    %v116 = vld [vmem:[#allocation5 + $0xb8] sm:$0xff]
    %v117 = vld [vmem:[#allocation5 + $0xc0] sm:$0xff]
    %v118 = vld [vmem:[#allocation5 + $0xc8] sm:$0xff]
    %v119 = vld [vmem:[#allocation5 + $0xd0] sm:$0xff]
    %v120 = vld [vmem:[#allocation5 + $0xd8] sm:$0xff]
    %v121 = vld [vmem:[#allocation5 + $0xe0] sm:$0xff]
    %v122 = vld [vmem:[#allocation5 + $0xe8] sm:$0xff]
    %v123 = vld [vmem:[#allocation5 + $0xf0] sm:$0xff]
    %v124 = vld [vmem:[#allocation5 + $0xf8] sm:$0xff]
    %v125 = vld [vmem:[#allocation7] sm:$0x3]
    %v127 = vperm.slane %v125, 0
    %v128 = vperm.slane %v125, 1
    %v131 = vand.u32 %v123, 4294901760
    %132 = vmatpush.msra.mxu0 %v131
    %v133 = vand.u32 %v121, 4294901760
    %134 = vmatpush.msra.mxu0 %v133
    %v135 = vand.u32 %v119, 4294901760
    %136 = vmatpush.msra.mxu0 %v135
    %v137 = vand.u32 %v117, 4294901760
    %138 = vmatpush.msra.mxu0 %v137
    %v139 = vand.u32 %v115, 4294901760
    %140 = vmatpush.msra.mxu0 %v139
    %v141 = vand.u32 %v113, 4294901760
    %142 = vmatpush.msra.mxu0 %v141
    %v143 = vand.u32 %v111, 4294901760
    %144 = vmatpush.msra.mxu0 %v143
    %v145 = vand.u32 %v109, 4294901760
    %146 = vmatpush.msra.mxu0 %v145
    %v147 = vand.u32 %v107, 4294901760
    %148 = vmatpush.msra.mxu0 %v147
    %v149 = vand.u32 %v105, 4294901760
    %150 = vmatpush.msra.mxu0 %v149
    %v151 = vand.u32 %v103, 4294901760
    %152 = vmatpush.msra.mxu0 %v151
    %v153 = vand.u32 %v101, 4294901760
    %154 = vmatpush.msra.mxu0 %v153
    %v155 = vand.u32 %v99, 4294901760
    %156 = vmatpush.msra.mxu0 %v155
    %v157 = vand.u32 %v97, 4294901760
    %158 = vmatpush.msra.mxu0 %v157
    %v159 = vand.u32 %v95, 4294901760
    %160 = vmatpush.msra.mxu0 %v159
    %v161 = vand.u32 %v93, 4294901760
    %162 = vmatpush.msra.mxu0 %v161
    %v163 = vand.u32 %v91, 4294901760
    %v164 = vsub.f32 %v91, %v163
    %v165 = vand.u32 %v164, 4294901760
    %v166 = vsub.f32 %v164, %v165
    %v167 = vand.u32 %v166, 4294901760
    %168 = vmatmul.f32.gmra.mxu0 %v167
    %v169 = vpop.f32.mrf.mxu0
    %v170 = vadd.f32 %v127, %v169
    %v171 = vand.u32 %v92, 4294901760
    %v172 = vsub.f32 %v92, %v171
    %v173 = vand.u32 %v172, 4294901760
    %v174 = vsub.f32 %v172, %v173
    %v175 = vand.u32 %v174, 4294901760
    %176 = vmatmul.f32.gmra.mxu0 %v175
    %v177 = vpop.f32.mrf.mxu0
    %v178 = vadd.f32 %v127, %v177
    %179 = vdwg.mxu0
    %v180 = vand.u32 %v123, 4294901760
    %v181 = vsub.f32 %v123, %v180
    %v182 = vand.u32 %v181, 4294901760
    %v183 = vsub.f32 %v181, %v182
    %v184 = vand.u32 %v183, 4294901760
    %185 = vmatpush.msra.mxu0 %v184
    %v186 = vand.u32 %v121, 4294901760
    %v187 = vsub.f32 %v121, %v186
    %v188 = vand.u32 %v187, 4294901760
    %v189 = vsub.f32 %v187, %v188
    %v190 = vand.u32 %v189, 4294901760
    %191 = vmatpush.msra.mxu0 %v190
    %v192 = vand.u32 %v119, 4294901760
    %v193 = vsub.f32 %v119, %v192
    %v194 = vand.u32 %v193, 4294901760
    %v195 = vsub.f32 %v193, %v194
    %v196 = vand.u32 %v195, 4294901760
    %197 = vmatpush.msra.mxu0 %v196
    %v198 = vand.u32 %v117, 4294901760
    %v199 = vsub.f32 %v117, %v198
    %v200 = vand.u32 %v199, 4294901760
    %v201 = vsub.f32 %v199, %v200
    %v202 = vand.u32 %v201, 4294901760
    %203 = vmatpush.msra.mxu0 %v202
    %v204 = vand.u32 %v115, 4294901760
    %v205 = vsub.f32 %v115, %v204
    %v206 = vand.u32 %v205, 4294901760
    %v207 = vsub.f32 %v205, %v206
    %v208 = vand.u32 %v207, 4294901760
    %209 = vmatpush.msra.mxu0 %v208
    %v210 = vand.u32 %v113, 4294901760
    %v211 = vsub.f32 %v113, %v210
    %v212 = vand.u32 %v211, 4294901760
    %v213 = vsub.f32 %v211, %v212
    %v214 = vand.u32 %v213, 4294901760
    %215 = vmatpush.msra.mxu0 %v214
    %v216 = vand.u32 %v111, 4294901760
    %v217 = vsub.f32 %v111, %v216
    %v218 = vand.u32 %v217, 4294901760
    %v219 = vsub.f32 %v217, %v218
    %v220 = vand.u32 %v219, 4294901760
    %221 = vmatpush.msra.mxu0 %v220
    %v222 = vand.u32 %v109, 4294901760
    %v223 = vsub.f32 %v109, %v222
    %v224 = vand.u32 %v223, 4294901760
    %v225 = vsub.f32 %v223, %v224
    %v226 = vand.u32 %v225, 4294901760
    %227 = vmatpush.msra.mxu0 %v226
    %v228 = vand.u32 %v107, 4294901760
    %v229 = vsub.f32 %v107, %v228
    %v230 = vand.u32 %v229, 4294901760
    %v231 = vsub.f32 %v229, %v230
    %v232 = vand.u32 %v231, 4294901760
    %233 = vmatpush.msra.mxu0 %v232
    %v234 = vand.u32 %v105, 4294901760
    %v235 = vsub.f32 %v105, %v234
    %v236 = vand.u32 %v235, 4294901760
    %v237 = vsub.f32 %v235, %v236
    %v238 = vand.u32 %v237, 4294901760
    %239 = vmatpush.msra.mxu0 %v238
    %v240 = vand.u32 %v103, 4294901760
    %v241 = vsub.f32 %v103, %v240
    %v242 = vand.u32 %v241, 4294901760
    %v243 = vsub.f32 %v241, %v242
    %v244 = vand.u32 %v243, 4294901760
    %245 = vmatpush.msra.mxu0 %v244
    %v246 = vand.u32 %v101, 4294901760
    %v247 = vsub.f32 %v101, %v246
    %v248 = vand.u32 %v247, 4294901760
    %v249 = vsub.f32 %v247, %v248
    %v250 = vand.u32 %v249, 4294901760
    %251 = vmatpush.msra.mxu0 %v250
    %v252 = vand.u32 %v99, 4294901760
    %v253 = vsub.f32 %v99, %v252
    %v254 = vand.u32 %v253, 4294901760
    %v255 = vsub.f32 %v253, %v254
    %v256 = vand.u32 %v255, 4294901760
    %257 = vmatpush.msra.mxu0 %v256
    %v258 = vand.u32 %v97, 4294901760
    %v259 = vsub.f32 %v97, %v258
    %v260 = vand.u32 %v259, 4294901760
    %v261 = vsub.f32 %v259, %v260
    %v262 = vand.u32 %v261, 4294901760
    %263 = vmatpush.msra.mxu0 %v262
    %v264 = vand.u32 %v95, 4294901760
    %v265 = vsub.f32 %v95, %v264
    %v266 = vand.u32 %v265, 4294901760
    %v267 = vsub.f32 %v265, %v266
    %v268 = vand.u32 %v267, 4294901760
    %269 = vmatpush.msra.mxu0 %v268
    %v270 = vand.u32 %v93, 4294901760
    %v271 = vsub.f32 %v93, %v270
    %v272 = vand.u32 %v271, 4294901760
    %v273 = vsub.f32 %v271, %v272
    %v274 = vand.u32 %v273, 4294901760
    %275 = vmatpush.msra.mxu0 %v274
    %v276 = vand.u32 %v91, 4294901760
    %277 = vmatmul.f32.gmra.mxu0 %v276
    %v278 = vpop.f32.mrf.mxu0
    %v279 = vadd.f32 %v170, %v278
    %v280 = vand.u32 %v92, 4294901760
    %281 = vmatmul.f32.gmra.mxu0 %v280
    %v282 = vpop.f32.mrf.mxu0
    %v283 = vadd.f32 %v178, %v282
    %284 = vdwg.mxu0
    %v285 = vand.u32 %v123, 4294901760
    %v286 = vsub.f32 %v123, %v285
    %287 = vmatpush.msra.mxu0 %v286
    %v288 = vand.u32 %v121, 4294901760
    %v289 = vsub.f32 %v121, %v288
    %290 = vmatpush.msra.mxu0 %v289
    %v291 = vand.u32 %v119, 4294901760
    %v292 = vsub.f32 %v119, %v291
    %293 = vmatpush.msra.mxu0 %v292
    %v294 = vand.u32 %v117, 4294901760
    %v295 = vsub.f32 %v117, %v294
    %296 = vmatpush.msra.mxu0 %v295
    %v297 = vand.u32 %v115, 4294901760
    %v298 = vsub.f32 %v115, %v297
    %299 = vmatpush.msra.mxu0 %v298
    %v300 = vand.u32 %v113, 4294901760
    %v301 = vsub.f32 %v113, %v300
    %302 = vmatpush.msra.mxu0 %v301
    %v303 = vand.u32 %v111, 4294901760
    %v304 = vsub.f32 %v111, %v303
    %305 = vmatpush.msra.mxu0 %v304
    %v306 = vand.u32 %v109, 4294901760
    %v307 = vsub.f32 %v109, %v306
    %308 = vmatpush.msra.mxu0 %v307
    %v309 = vand.u32 %v107, 4294901760
    %v310 = vsub.f32 %v107, %v309
    %311 = vmatpush.msra.mxu0 %v310
    %v312 = vand.u32 %v105, 4294901760
    %v313 = vsub.f32 %v105, %v312
    %314 = vmatpush.msra.mxu0 %v313
    %v315 = vand.u32 %v103, 4294901760
    %v316 = vsub.f32 %v103, %v315
    %317 = vmatpush.msra.mxu0 %v316
    %v318 = vand.u32 %v101, 4294901760
    %v319 = vsub.f32 %v101, %v318
    %320 = vmatpush.msra.mxu0 %v319
    %v321 = vand.u32 %v99, 4294901760
    %v322 = vsub.f32 %v99, %v321
    %323 = vmatpush.msra.mxu0 %v322
    %v324 = vand.u32 %v97, 4294901760
    %v325 = vsub.f32 %v97, %v324
    %326 = vmatpush.msra.mxu0 %v325
    %v327 = vand.u32 %v95, 4294901760
    %v328 = vsub.f32 %v95, %v327
    %329 = vmatpush.msra.mxu0 %v328
    %v330 = vand.u32 %v93, 4294901760
    %v331 = vsub.f32 %v93, %v330
    %332 = vmatpush.msra.mxu0 %v331
    %v333 = vand.u32 %v91, 4294901760
    %v334 = vsub.f32 %v91, %v333
    %335 = vmatmul.f32.gmra.mxu0 %v334
    %v336 = vpop.f32.mrf.mxu0
    %v337 = vadd.f32 %v279, %v336
    %v338 = vand.u32 %v92, 4294901760
    %v339 = vsub.f32 %v92, %v338
    %340 = vmatmul.f32.gmra.mxu0 %v339
    %v341 = vpop.f32.mrf.mxu0
    %v342 = vadd.f32 %v283, %v341
    %343 = vdwg.mxu0
    %v344 = vand.u32 %v123, 4294901760
    %345 = vmatpush.msra.mxu0 %v344
    %v346 = vand.u32 %v121, 4294901760
    %347 = vmatpush.msra.mxu0 %v346
    %v348 = vand.u32 %v119, 4294901760
    %349 = vmatpush.msra.mxu0 %v348
    %v350 = vand.u32 %v117, 4294901760
    %351 = vmatpush.msra.mxu0 %v350
    %v352 = vand.u32 %v115, 4294901760
    %353 = vmatpush.msra.mxu0 %v352
    %v354 = vand.u32 %v113, 4294901760
    %355 = vmatpush.msra.mxu0 %v354
    %v356 = vand.u32 %v111, 4294901760
    %357 = vmatpush.msra.mxu0 %v356
    %v358 = vand.u32 %v109, 4294901760
    %359 = vmatpush.msra.mxu0 %v358
    %v360 = vand.u32 %v107, 4294901760
    %361 = vmatpush.msra.mxu0 %v360
    %v362 = vand.u32 %v105, 4294901760
    %363 = vmatpush.msra.mxu0 %v362
    %v364 = vand.u32 %v103, 4294901760
    %365 = vmatpush.msra.mxu0 %v364
    %v366 = vand.u32 %v101, 4294901760
    %367 = vmatpush.msra.mxu0 %v366
    %v368 = vand.u32 %v99, 4294901760
    %369 = vmatpush.msra.mxu0 %v368
    %v370 = vand.u32 %v97, 4294901760
    %371 = vmatpush.msra.mxu0 %v370
    %v372 = vand.u32 %v95, 4294901760
    %373 = vmatpush.msra.mxu0 %v372
    %v374 = vand.u32 %v93, 4294901760
    %375 = vmatpush.msra.mxu0 %v374
    %v376 = vand.u32 %v91, 4294901760
    %v377 = vsub.f32 %v91, %v376
    %v378 = vand.u32 %v377, 4294901760
    %379 = vmatmul.f32.gmra.mxu0 %v378
    %v380 = vpop.f32.mrf.mxu0
    %v381 = vadd.f32 %v337, %v380
    %v382 = vand.u32 %v92, 4294901760
    %v383 = vsub.f32 %v92, %v382
    %v384 = vand.u32 %v383, 4294901760
    %385 = vmatmul.f32.gmra.mxu0 %v384
    %v386 = vpop.f32.mrf.mxu0
    %v387 = vadd.f32 %v342, %v386
    %388 = vdwg.mxu0
    %v389 = vand.u32 %v123, 4294901760
    %v390 = vsub.f32 %v123, %v389
    %v391 = vand.u32 %v390, 4294901760
    %392 = vmatpush.msra.mxu0 %v391
    %v393 = vand.u32 %v121, 4294901760
    %v394 = vsub.f32 %v121, %v393
    %v395 = vand.u32 %v394, 4294901760
    %396 = vmatpush.msra.mxu0 %v395
    %v397 = vand.u32 %v119, 4294901760
    %v398 = vsub.f32 %v119, %v397
    %v399 = vand.u32 %v398, 4294901760
    %400 = vmatpush.msra.mxu0 %v399
    %v401 = vand.u32 %v117, 4294901760
    %v402 = vsub.f32 %v117, %v401
    %v403 = vand.u32 %v402, 4294901760
    %404 = vmatpush.msra.mxu0 %v403
    %v405 = vand.u32 %v115, 4294901760
    %v406 = vsub.f32 %v115, %v405
    %v407 = vand.u32 %v406, 4294901760
    %408 = vmatpush.msra.mxu0 %v407
    %v409 = vand.u32 %v113, 4294901760
    %v410 = vsub.f32 %v113, %v409
    %v411 = vand.u32 %v410, 4294901760
    %412 = vmatpush.msra.mxu0 %v411
    %v413 = vand.u32 %v111, 4294901760
    %v414 = vsub.f32 %v111, %v413
    %v415 = vand.u32 %v414, 4294901760
    %416 = vmatpush.msra.mxu0 %v415
    %v417 = vand.u32 %v109, 4294901760
    %v418 = vsub.f32 %v109, %v417
    %v419 = vand.u32 %v418, 4294901760
    %420 = vmatpush.msra.mxu0 %v419
    %v421 = vand.u32 %v107, 4294901760
    %v422 = vsub.f32 %v107, %v421
    %v423 = vand.u32 %v422, 4294901760
    %424 = vmatpush.msra.mxu0 %v423
    %v425 = vand.u32 %v105, 4294901760
    %v426 = vsub.f32 %v105, %v425
    %v427 = vand.u32 %v426, 4294901760
    %428 = vmatpush.msra.mxu0 %v427
    %v429 = vand.u32 %v103, 4294901760
    %v430 = vsub.f32 %v103, %v429
    %v431 = vand.u32 %v430, 4294901760
    %432 = vmatpush.msra.mxu0 %v431
    %v433 = vand.u32 %v101, 4294901760
    %v434 = vsub.f32 %v101, %v433
    %v435 = vand.u32 %v434, 4294901760
    %436 = vmatpush.msra.mxu0 %v435
    %v437 = vand.u32 %v99, 4294901760
    %v438 = vsub.f32 %v99, %v437
    %v439 = vand.u32 %v438, 4294901760
    %440 = vmatpush.msra.mxu0 %v439
    %v441 = vand.u32 %v97, 4294901760
    %v442 = vsub.f32 %v97, %v441
    %v443 = vand.u32 %v442, 4294901760
    %444 = vmatpush.msra.mxu0 %v443
    %v445 = vand.u32 %v95, 4294901760
    %v446 = vsub.f32 %v95, %v445
    %v447 = vand.u32 %v446, 4294901760
    %448 = vmatpush.msra.mxu0 %v447
    %v449 = vand.u32 %v93, 4294901760
    %v450 = vsub.f32 %v93, %v449
    %v451 = vand.u32 %v450, 4294901760
    %452 = vmatpush.msra.mxu0 %v451
    %v453 = vand.u32 %v91, 4294901760
    %454 = vmatmul.f32.gmra.mxu0 %v453
    %v455 = vpop.f32.mrf.mxu0
    %v456 = vadd.f32 %v381, %v455
    %v457 = vand.u32 %v92, 4294901760
    %458 = vmatmul.f32.gmra.mxu0 %v457
    %v459 = vpop.f32.mrf.mxu0
    %v460 = vadd.f32 %v387, %v459
    %461 = vdwg.mxu0
    %v462 = vand.u32 %v123, 4294901760
    %463 = vmatpush.msra.mxu0 %v462
    %v464 = vand.u32 %v121, 4294901760
    %465 = vmatpush.msra.mxu0 %v464
    %v466 = vand.u32 %v119, 4294901760
    %467 = vmatpush.msra.mxu0 %v466
    %v468 = vand.u32 %v117, 4294901760
    %469 = vmatpush.msra.mxu0 %v468
    %v470 = vand.u32 %v115, 4294901760
    %471 = vmatpush.msra.mxu0 %v470
    %v472 = vand.u32 %v113, 4294901760
    %473 = vmatpush.msra.mxu0 %v472
    %v474 = vand.u32 %v111, 4294901760
    %475 = vmatpush.msra.mxu0 %v474
    %v476 = vand.u32 %v109, 4294901760
    %477 = vmatpush.msra.mxu0 %v476
    %v478 = vand.u32 %v107, 4294901760
    %479 = vmatpush.msra.mxu0 %v478
    %v480 = vand.u32 %v105, 4294901760
    %481 = vmatpush.msra.mxu0 %v480
    %v482 = vand.u32 %v103, 4294901760
    %483 = vmatpush.msra.mxu0 %v482
    %v484 = vand.u32 %v101, 4294901760
    %485 = vmatpush.msra.mxu0 %v484
    %v486 = vand.u32 %v99, 4294901760
    %487 = vmatpush.msra.mxu0 %v486
    %v488 = vand.u32 %v97, 4294901760
    %489 = vmatpush.msra.mxu0 %v488
    %v490 = vand.u32 %v95, 4294901760
    %491 = vmatpush.msra.mxu0 %v490
    %v492 = vand.u32 %v93, 4294901760
    %493 = vmatpush.msra.mxu0 %v492
    %v494 = vand.u32 %v91, 4294901760
    %495 = vmatmul.f32.gmra.mxu0 %v494
    %v496 = vpop.f32.mrf.mxu0
    %v497 = vadd.f32 %v456, %v496
    %v498 = vand.u32 %v92, 4294901760
    %499 = vmatmul.f32.gmra.mxu0 %v498
    %v500 = vpop.f32.mrf.mxu0
    %v501 = vadd.f32 %v460, %v500
    %502 = vdwg.mxu0
    %v503 = vand.u32 %v124, 4294901760
    %504 = vmatpush.msra.mxu0 %v503
    %v505 = vand.u32 %v122, 4294901760
    %506 = vmatpush.msra.mxu0 %v505
    %v507 = vand.u32 %v120, 4294901760
    %508 = vmatpush.msra.mxu0 %v507
    %v509 = vand.u32 %v118, 4294901760
    %510 = vmatpush.msra.mxu0 %v509
    %v511 = vand.u32 %v116, 4294901760
    %512 = vmatpush.msra.mxu0 %v511
    %v513 = vand.u32 %v114, 4294901760
    %514 = vmatpush.msra.mxu0 %v513
    %v515 = vand.u32 %v112, 4294901760
    %516 = vmatpush.msra.mxu0 %v515
    %v517 = vand.u32 %v110, 4294901760
    %518 = vmatpush.msra.mxu0 %v517
    %v519 = vand.u32 %v108, 4294901760
    %520 = vmatpush.msra.mxu0 %v519
    %v521 = vand.u32 %v106, 4294901760
    %522 = vmatpush.msra.mxu0 %v521
    %v523 = vand.u32 %v104, 4294901760
    %524 = vmatpush.msra.mxu0 %v523
    %v525 = vand.u32 %v102, 4294901760
    %526 = vmatpush.msra.mxu0 %v525
    %v527 = vand.u32 %v100, 4294901760
    %528 = vmatpush.msra.mxu0 %v527
    %v529 = vand.u32 %v98, 4294901760
    %530 = vmatpush.msra.mxu0 %v529
    %v531 = vand.u32 %v96, 4294901760
    %532 = vmatpush.msra.mxu0 %v531
    %v533 = vand.u32 %v94, 4294901760
    %534 = vmatpush.msra.mxu0 %v533
    %v535 = vand.u32 %v91, 4294901760
    %v536 = vsub.f32 %v91, %v535
    %v537 = vand.u32 %v536, 4294901760
    %v538 = vsub.f32 %v536, %v537
    %v539 = vand.u32 %v538, 4294901760
    %540 = vmatmul.f32.gmra.mxu0 %v539
    %v541 = vpop.f32.mrf.mxu0
    %v542 = vadd.f32 %v128, %v541
    %v543 = vand.u32 %v92, 4294901760
    %v544 = vsub.f32 %v92, %v543
    %v545 = vand.u32 %v544, 4294901760
    %v546 = vsub.f32 %v544, %v545
    %v547 = vand.u32 %v546, 4294901760
    %548 = vmatmul.f32.gmra.mxu0 %v547
    %v549 = vpop.f32.mrf.mxu0
    %v550 = vadd.f32 %v128, %v549
    %551 = vdwg.mxu0
    %v552 = vand.u32 %v124, 4294901760
    %v553 = vsub.f32 %v124, %v552
    %v554 = vand.u32 %v553, 4294901760
    %v555 = vsub.f32 %v553, %v554
    %v556 = vand.u32 %v555, 4294901760
    %557 = vmatpush.msra.mxu0 %v556
    %v558 = vand.u32 %v122, 4294901760
    %v559 = vsub.f32 %v122, %v558
    %v560 = vand.u32 %v559, 4294901760
    %v561 = vsub.f32 %v559, %v560
    %v562 = vand.u32 %v561, 4294901760
    %563 = vmatpush.msra.mxu0 %v562
    %v564 = vand.u32 %v120, 4294901760
    %v565 = vsub.f32 %v120, %v564
    %v566 = vand.u32 %v565, 4294901760
    %v567 = vsub.f32 %v565, %v566
    %v568 = vand.u32 %v567, 4294901760
    %569 = vmatpush.msra.mxu0 %v568
    %v570 = vand.u32 %v118, 4294901760
    %v571 = vsub.f32 %v118, %v570
    %v572 = vand.u32 %v571, 4294901760
    %v573 = vsub.f32 %v571, %v572
    %v574 = vand.u32 %v573, 4294901760
    %575 = vmatpush.msra.mxu0 %v574
    %v576 = vand.u32 %v116, 4294901760
    %v577 = vsub.f32 %v116, %v576
    %v578 = vand.u32 %v577, 4294901760
    %v579 = vsub.f32 %v577, %v578
    %v580 = vand.u32 %v579, 4294901760
    %581 = vmatpush.msra.mxu0 %v580
    %v582 = vand.u32 %v114, 4294901760
    %v583 = vsub.f32 %v114, %v582
    %v584 = vand.u32 %v583, 4294901760
    %v585 = vsub.f32 %v583, %v584
    %v586 = vand.u32 %v585, 4294901760
    %587 = vmatpush.msra.mxu0 %v586
    %v588 = vand.u32 %v112, 4294901760
    %v589 = vsub.f32 %v112, %v588
    %v590 = vand.u32 %v589, 4294901760
    %v591 = vsub.f32 %v589, %v590
    %v592 = vand.u32 %v591, 4294901760
    %593 = vmatpush.msra.mxu0 %v592
    %v594 = vand.u32 %v110, 4294901760
    %v595 = vsub.f32 %v110, %v594
    %v596 = vand.u32 %v595, 4294901760
    %v597 = vsub.f32 %v595, %v596
    %v598 = vand.u32 %v597, 4294901760
    %599 = vmatpush.msra.mxu0 %v598
    %v600 = vand.u32 %v108, 4294901760
    %v601 = vsub.f32 %v108, %v600
    %v602 = vand.u32 %v601, 4294901760
    %v603 = vsub.f32 %v601, %v602
    %v604 = vand.u32 %v603, 4294901760
    %605 = vmatpush.msra.mxu0 %v604
    %v606 = vand.u32 %v106, 4294901760
    %v607 = vsub.f32 %v106, %v606
    %v608 = vand.u32 %v607, 4294901760
    %v609 = vsub.f32 %v607, %v608
    %v610 = vand.u32 %v609, 4294901760
    %611 = vmatpush.msra.mxu0 %v610
    %v612 = vand.u32 %v104, 4294901760
    %v613 = vsub.f32 %v104, %v612
    %v614 = vand.u32 %v613, 4294901760
    %v615 = vsub.f32 %v613, %v614
    %v616 = vand.u32 %v615, 4294901760
    %617 = vmatpush.msra.mxu0 %v616
    %v618 = vand.u32 %v102, 4294901760
    %v619 = vsub.f32 %v102, %v618
    %v620 = vand.u32 %v619, 4294901760
    %v621 = vsub.f32 %v619, %v620
    %v622 = vand.u32 %v621, 4294901760
    %623 = vmatpush.msra.mxu0 %v622
    %v624 = vand.u32 %v100, 4294901760
    %v625 = vsub.f32 %v100, %v624
    %v626 = vand.u32 %v625, 4294901760
    %v627 = vsub.f32 %v625, %v626
    %v628 = vand.u32 %v627, 4294901760
    %629 = vmatpush.msra.mxu0 %v628
    %v630 = vand.u32 %v98, 4294901760
    %v631 = vsub.f32 %v98, %v630
    %v632 = vand.u32 %v631, 4294901760
    %v633 = vsub.f32 %v631, %v632
    %v634 = vand.u32 %v633, 4294901760
    %635 = vmatpush.msra.mxu0 %v634
    %v636 = vand.u32 %v96, 4294901760
    %v637 = vsub.f32 %v96, %v636
    %v638 = vand.u32 %v637, 4294901760
    %v639 = vsub.f32 %v637, %v638
    %v640 = vand.u32 %v639, 4294901760
    %641 = vmatpush.msra.mxu0 %v640
    %v642 = vand.u32 %v94, 4294901760
    %v643 = vsub.f32 %v94, %v642
    %v644 = vand.u32 %v643, 4294901760
    %v645 = vsub.f32 %v643, %v644
    %v646 = vand.u32 %v645, 4294901760
    %647 = vmatpush.msra.mxu0 %v646
    %v648 = vand.u32 %v91, 4294901760
    %649 = vmatmul.f32.gmra.mxu0 %v648
    %v650 = vpop.f32.mrf.mxu0
    %v651 = vadd.f32 %v542, %v650
    %v652 = vand.u32 %v92, 4294901760
    %653 = vmatmul.f32.gmra.mxu0 %v652
    %v654 = vpop.f32.mrf.mxu0
    %v655 = vadd.f32 %v550, %v654
    %656 = vdwg.mxu0
    %v657 = vand.u32 %v124, 4294901760
    %v658 = vsub.f32 %v124, %v657
    %659 = vmatpush.msra.mxu0 %v658
    %v660 = vand.u32 %v122, 4294901760
    %v661 = vsub.f32 %v122, %v660
    %662 = vmatpush.msra.mxu0 %v661
    %v663 = vand.u32 %v120, 4294901760
    %v664 = vsub.f32 %v120, %v663
    %665 = vmatpush.msra.mxu0 %v664
    %v666 = vand.u32 %v118, 4294901760
    %v667 = vsub.f32 %v118, %v666
    %668 = vmatpush.msra.mxu0 %v667
    %v669 = vand.u32 %v116, 4294901760
    %v670 = vsub.f32 %v116, %v669
    %671 = vmatpush.msra.mxu0 %v670
    %v672 = vand.u32 %v114, 4294901760
    %v673 = vsub.f32 %v114, %v672
    %674 = vmatpush.msra.mxu0 %v673
    %v675 = vand.u32 %v112, 4294901760
    %v676 = vsub.f32 %v112, %v675
    %677 = vmatpush.msra.mxu0 %v676
    %v678 = vand.u32 %v110, 4294901760
    %v679 = vsub.f32 %v110, %v678
    %680 = vmatpush.msra.mxu0 %v679
    %v681 = vand.u32 %v108, 4294901760
    %v682 = vsub.f32 %v108, %v681
    %683 = vmatpush.msra.mxu0 %v682
    %v684 = vand.u32 %v106, 4294901760
    %v685 = vsub.f32 %v106, %v684
    %686 = vmatpush.msra.mxu0 %v685
    %v687 = vand.u32 %v104, 4294901760
    %v688 = vsub.f32 %v104, %v687
    %689 = vmatpush.msra.mxu0 %v688
    %v690 = vand.u32 %v102, 4294901760
    %v691 = vsub.f32 %v102, %v690
    %692 = vmatpush.msra.mxu0 %v691
    %v693 = vand.u32 %v100, 4294901760
    %v694 = vsub.f32 %v100, %v693
    %695 = vmatpush.msra.mxu0 %v694
    %v696 = vand.u32 %v98, 4294901760
    %v697 = vsub.f32 %v98, %v696
    %698 = vmatpush.msra.mxu0 %v697
    %v699 = vand.u32 %v96, 4294901760
    %v700 = vsub.f32 %v96, %v699
    %701 = vmatpush.msra.mxu0 %v700
    %v702 = vand.u32 %v94, 4294901760
    %v703 = vsub.f32 %v94, %v702
    %704 = vmatpush.msra.mxu0 %v703
    %v705 = vand.u32 %v91, 4294901760
    %v706 = vsub.f32 %v91, %v705
    %707 = vmatmul.f32.gmra.mxu0 %v706
    %v708 = vpop.f32.mrf.mxu0
    %v709 = vadd.f32 %v651, %v708
    %v710 = vand.u32 %v92, 4294901760
    %v711 = vsub.f32 %v92, %v710
    %712 = vmatmul.f32.gmra.mxu0 %v711
    %v713 = vpop.f32.mrf.mxu0
    %v714 = vadd.f32 %v655, %v713
    %715 = vdwg.mxu0
    %v716 = vand.u32 %v124, 4294901760
    %717 = vmatpush.msra.mxu0 %v716
    %v718 = vand.u32 %v122, 4294901760
    %719 = vmatpush.msra.mxu0 %v718
    %v720 = vand.u32 %v120, 4294901760
    %721 = vmatpush.msra.mxu0 %v720
    %v722 = vand.u32 %v118, 4294901760
    %723 = vmatpush.msra.mxu0 %v722
    %v724 = vand.u32 %v116, 4294901760
    %725 = vmatpush.msra.mxu0 %v724
    %v726 = vand.u32 %v114, 4294901760
    %727 = vmatpush.msra.mxu0 %v726
    %v728 = vand.u32 %v112, 4294901760
    %729 = vmatpush.msra.mxu0 %v728
    %v730 = vand.u32 %v110, 4294901760
    %731 = vmatpush.msra.mxu0 %v730
    %v732 = vand.u32 %v108, 4294901760
    %733 = vmatpush.msra.mxu0 %v732
    %v734 = vand.u32 %v106, 4294901760
    %735 = vmatpush.msra.mxu0 %v734
    %v736 = vand.u32 %v104, 4294901760
    %737 = vmatpush.msra.mxu0 %v736
    %v738 = vand.u32 %v102, 4294901760
    %739 = vmatpush.msra.mxu0 %v738
    %v740 = vand.u32 %v100, 4294901760
    %741 = vmatpush.msra.mxu0 %v740
    %v742 = vand.u32 %v98, 4294901760
    %743 = vmatpush.msra.mxu0 %v742
    %v744 = vand.u32 %v96, 4294901760
    %745 = vmatpush.msra.mxu0 %v744
    %v746 = vand.u32 %v94, 4294901760
    %747 = vmatpush.msra.mxu0 %v746
    %v748 = vand.u32 %v91, 4294901760
    %v749 = vsub.f32 %v91, %v748
    %v750 = vand.u32 %v749, 4294901760
    %751 = vmatmul.f32.gmra.mxu0 %v750
    %v752 = vpop.f32.mrf.mxu0
    %v753 = vadd.f32 %v709, %v752
    %v754 = vand.u32 %v92, 4294901760
    %v755 = vsub.f32 %v92, %v754
    %v756 = vand.u32 %v755, 4294901760
    %757 = vmatmul.f32.gmra.mxu0 %v756
    %v758 = vpop.f32.mrf.mxu0
    %v759 = vadd.f32 %v714, %v758
    %760 = vdwg.mxu0
    %v761 = vand.u32 %v124, 4294901760
    %v762 = vsub.f32 %v124, %v761
    %v763 = vand.u32 %v762, 4294901760
    %764 = vmatpush.msra.mxu0 %v763
    %v765 = vand.u32 %v122, 4294901760
    %v766 = vsub.f32 %v122, %v765
    %v767 = vand.u32 %v766, 4294901760
    %768 = vmatpush.msra.mxu0 %v767
    %v769 = vand.u32 %v120, 4294901760
    %v770 = vsub.f32 %v120, %v769
    %v771 = vand.u32 %v770, 4294901760
    %772 = vmatpush.msra.mxu0 %v771
    %v773 = vand.u32 %v118, 4294901760
    %v774 = vsub.f32 %v118, %v773
    %v775 = vand.u32 %v774, 4294901760
    %776 = vmatpush.msra.mxu0 %v775
    %v777 = vand.u32 %v116, 4294901760
    %v778 = vsub.f32 %v116, %v777
    %v779 = vand.u32 %v778, 4294901760
    %780 = vmatpush.msra.mxu0 %v779
    %v781 = vand.u32 %v114, 4294901760
    %v782 = vsub.f32 %v114, %v781
    %v783 = vand.u32 %v782, 4294901760
    %784 = vmatpush.msra.mxu0 %v783
    %v785 = vand.u32 %v112, 4294901760
    %v786 = vsub.f32 %v112, %v785
    %v787 = vand.u32 %v786, 4294901760
    %788 = vmatpush.msra.mxu0 %v787
    %v789 = vand.u32 %v110, 4294901760
    %v790 = vsub.f32 %v110, %v789
    %v791 = vand.u32 %v790, 4294901760
    %792 = vmatpush.msra.mxu0 %v791
    %v793 = vand.u32 %v108, 4294901760
    %v794 = vsub.f32 %v108, %v793
    %v795 = vand.u32 %v794, 4294901760
    %796 = vmatpush.msra.mxu0 %v795
    %v797 = vand.u32 %v106, 4294901760
    %v798 = vsub.f32 %v106, %v797
    %v799 = vand.u32 %v798, 4294901760
    %800 = vmatpush.msra.mxu0 %v799
    %v801 = vand.u32 %v104, 4294901760
    %v802 = vsub.f32 %v104, %v801
    %v803 = vand.u32 %v802, 4294901760
    %804 = vmatpush.msra.mxu0 %v803
    %v805 = vand.u32 %v102, 4294901760
    %v806 = vsub.f32 %v102, %v805
    %v807 = vand.u32 %v806, 4294901760
    %808 = vmatpush.msra.mxu0 %v807
    %v809 = vand.u32 %v100, 4294901760
    %v810 = vsub.f32 %v100, %v809
    %v811 = vand.u32 %v810, 4294901760
    %812 = vmatpush.msra.mxu0 %v811
    %v813 = vand.u32 %v98, 4294901760
    %v814 = vsub.f32 %v98, %v813
    %v815 = vand.u32 %v814, 4294901760
    %816 = vmatpush.msra.mxu0 %v815
    %v817 = vand.u32 %v96, 4294901760
    %v818 = vsub.f32 %v96, %v817
    %v819 = vand.u32 %v818, 4294901760
    %820 = vmatpush.msra.mxu0 %v819
    %v821 = vand.u32 %v94, 4294901760
    %v822 = vsub.f32 %v94, %v821
    %v823 = vand.u32 %v822, 4294901760
    %824 = vmatpush.msra.mxu0 %v823
    %v825 = vand.u32 %v91, 4294901760
    %826 = vmatmul.f32.gmra.mxu0 %v825
    %v827 = vpop.f32.mrf.mxu0
    %v828 = vadd.f32 %v753, %v827
    %v829 = vand.u32 %v92, 4294901760
    %830 = vmatmul.f32.gmra.mxu0 %v829
    %v831 = vpop.f32.mrf.mxu0
    %v832 = vadd.f32 %v759, %v831
    %833 = vdwg.mxu0
    %v834 = vand.u32 %v124, 4294901760
    %835 = vmatpush.msra.mxu0 %v834
    %v836 = vand.u32 %v122, 4294901760
    %837 = vmatpush.msra.mxu0 %v836
    %v838 = vand.u32 %v120, 4294901760
    %839 = vmatpush.msra.mxu0 %v838
    %v840 = vand.u32 %v118, 4294901760
    %841 = vmatpush.msra.mxu0 %v840
    %v842 = vand.u32 %v116, 4294901760
    %843 = vmatpush.msra.mxu0 %v842
    %v844 = vand.u32 %v114, 4294901760
    %845 = vmatpush.msra.mxu0 %v844
    %v846 = vand.u32 %v112, 4294901760
    %847 = vmatpush.msra.mxu0 %v846
    %v848 = vand.u32 %v110, 4294901760
    %849 = vmatpush.msra.mxu0 %v848
    %v850 = vand.u32 %v108, 4294901760
    %851 = vmatpush.msra.mxu0 %v850
    %v852 = vand.u32 %v106, 4294901760
    %853 = vmatpush.msra.mxu0 %v852
    %v854 = vand.u32 %v104, 4294901760
    %855 = vmatpush.msra.mxu0 %v854
    %v856 = vand.u32 %v102, 4294901760
    %857 = vmatpush.msra.mxu0 %v856
    %v858 = vand.u32 %v100, 4294901760
    %859 = vmatpush.msra.mxu0 %v858
    %v860 = vand.u32 %v98, 4294901760
    %861 = vmatpush.msra.mxu0 %v860
    %v862 = vand.u32 %v96, 4294901760
    %863 = vmatpush.msra.mxu0 %v862
    %v864 = vand.u32 %v94, 4294901760
    %865 = vmatpush.msra.mxu0 %v864
    %v866 = vand.u32 %v91, 4294901760
    %867 = vmatmul.f32.gmra.mxu0 %v866
    %v868 = vpop.f32.mrf.mxu0
    %v869 = vadd.f32 %v828, %v868
    %v870 = vand.u32 %v92, 4294901760
    %871 = vmatmul.f32.gmra.mxu0 %v870
    %v872 = vpop.f32.mrf.mxu0
    %v873 = vadd.f32 %v832, %v872
    %874 = vdwg.mxu0
    %v875 = vmax.f32 %v497, 0.0
    %v876 = vmax.f32 %v869, 0.0
    %v877 = vmax.f32 %v501, 0.0
    %v878 = vmax.f32 %v873, 0.0
    %v879 = vld [vmem:[#allocation8] sm:$0xff]
    %v880 = vld [vmem:[#allocation8 + $0x8] sm:$0xff]
    %v881 = vld [vmem:[#allocation8 + $0x10] sm:$0xff]
    %v882 = vld [vmem:[#allocation8 + $0x18] sm:$0xff]
    %v883 = vld [vmem:[#allocation8 + $0x20] sm:$0xff]
    %v884 = vld [vmem:[#allocation8 + $0x28] sm:$0xff]
    %v885 = vld [vmem:[#allocation8 + $0x30] sm:$0xff]
    %v886 = vld [vmem:[#allocation8 + $0x38] sm:$0xff]
    %v887 = vld [vmem:[#allocation8 + $0x40] sm:$0xff]
    %v888 = vld [vmem:[#allocation8 + $0x48] sm:$0xff]
    %v889 = vld [vmem:[#allocation8 + $0x50] sm:$0xff]
    %v890 = vld [vmem:[#allocation8 + $0x58] sm:$0xff]
    %v891 = vld [vmem:[#allocation8 + $0x60] sm:$0xff]
    %v892 = vld [vmem:[#allocation8 + $0x68] sm:$0xff]
    %v893 = vld [vmem:[#allocation8 + $0x70] sm:$0xff]
    %v894 = vld [vmem:[#allocation8 + $0x78] sm:$0xff]
    %v895 = vld [vmem:[#allocation8 + $0x80] sm:$0xff]
    %v896 = vld [vmem:[#allocation8 + $0x88] sm:$0xff]
    %v897 = vld [vmem:[#allocation8 + $0x90] sm:$0xff]
    %v898 = vld [vmem:[#allocation8 + $0x98] sm:$0xff]
    %v899 = vld [vmem:[#allocation8 + $0xa0] sm:$0xff]
    %v900 = vld [vmem:[#allocation8 + $0xa8] sm:$0xff]
    %v901 = vld [vmem:[#allocation8 + $0xb0] sm:$0xff]
    %v902 = vld [vmem:[#allocation8 + $0xb8] sm:$0xff]
    %v903 = vld [vmem:[#allocation8 + $0xc0] sm:$0xff]
    %v904 = vld [vmem:[#allocation8 + $0xc8] sm:$0xff]
    %v905 = vld [vmem:[#allocation8 + $0xd0] sm:$0xff]
    %v906 = vld [vmem:[#allocation8 + $0xd8] sm:$0xff]
    %v907 = vld [vmem:[#allocation8 + $0xe0] sm:$0xff]
    %v908 = vld [vmem:[#allocation8 + $0xe8] sm:$0xff]
    %v909 = vld [vmem:[#allocation8 + $0xf0] sm:$0xff]
    %v910 = vld [vmem:[#allocation8 + $0xf8] sm:$0xff]
    %v911 = vld [vmem:[%s4] sm:$0x1]
    %v913 = vperm.slane %v911, 0
    %v915 = vand.u32 %v894, 4294901760
    %916 = vmatpush.msra.mxu0 %v915
    %v917 = vand.u32 %v893, 4294901760
    %918 = vmatpush.msra.mxu0 %v917
    %v919 = vand.u32 %v892, 4294901760
    %920 = vmatpush.msra.mxu0 %v919
    %v921 = vand.u32 %v891, 4294901760
    %922 = vmatpush.msra.mxu0 %v921
    %v923 = vand.u32 %v890, 4294901760
    %924 = vmatpush.msra.mxu0 %v923
    %v925 = vand.u32 %v889, 4294901760
    %926 = vmatpush.msra.mxu0 %v925
    %v927 = vand.u32 %v888, 4294901760
    %928 = vmatpush.msra.mxu0 %v927
    %v929 = vand.u32 %v887, 4294901760
    %930 = vmatpush.msra.mxu0 %v929
    %v931 = vand.u32 %v886, 4294901760
    %932 = vmatpush.msra.mxu0 %v931
    %v933 = vand.u32 %v885, 4294901760
    %934 = vmatpush.msra.mxu0 %v933
    %v935 = vand.u32 %v884, 4294901760
    %936 = vmatpush.msra.mxu0 %v935
    %v937 = vand.u32 %v883, 4294901760
    %938 = vmatpush.msra.mxu0 %v937
    %v939 = vand.u32 %v882, 4294901760
    %940 = vmatpush.msra.mxu0 %v939
    %v941 = vand.u32 %v881, 4294901760
    %942 = vmatpush.msra.mxu0 %v941
    %v943 = vand.u32 %v880, 4294901760
    %944 = vmatpush.msra.mxu0 %v943
    %v945 = vand.u32 %v879, 4294901760
    %946 = vmatpush.msra.mxu0 %v945
    %v947 = vand.u32 %v875, 4294901760
    %v948 = vsub.f32 %v875, %v947
    %v949 = vand.u32 %v948, 4294901760
    %v950 = vsub.f32 %v948, %v949
    %v951 = vand.u32 %v950, 4294901760
    %952 = vmatmul.f32.gmra.mxu0 %v951
    %v953 = vpop.f32.mrf.mxu0
    %v954 = vadd.f32 %v913, %v953
    %v955 = vand.u32 %v877, 4294901760
    %v956 = vsub.f32 %v877, %v955
    %v957 = vand.u32 %v956, 4294901760
    %v958 = vsub.f32 %v956, %v957
    %v959 = vand.u32 %v958, 4294901760
    %960 = vmatmul.f32.gmra.mxu0 %v959
    %v961 = vpop.f32.mrf.mxu0
    %v962 = vadd.f32 %v913, %v961
    %963 = vdwg.mxu0
    %v964 = vand.u32 %v894, 4294901760
    %v965 = vsub.f32 %v894, %v964
    %v966 = vand.u32 %v965, 4294901760
    %v967 = vsub.f32 %v965, %v966
    %v968 = vand.u32 %v967, 4294901760
    %969 = vmatpush.msra.mxu0 %v968
    %v970 = vand.u32 %v893, 4294901760
    %v971 = vsub.f32 %v893, %v970
    %v972 = vand.u32 %v971, 4294901760
    %v973 = vsub.f32 %v971, %v972
    %v974 = vand.u32 %v973, 4294901760
    %975 = vmatpush.msra.mxu0 %v974
    %v976 = vand.u32 %v892, 4294901760
    %v977 = vsub.f32 %v892, %v976
    %v978 = vand.u32 %v977, 4294901760
    %v979 = vsub.f32 %v977, %v978
    %v980 = vand.u32 %v979, 4294901760
    %981 = vmatpush.msra.mxu0 %v980
    %v982 = vand.u32 %v891, 4294901760
    %v983 = vsub.f32 %v891, %v982
    %v984 = vand.u32 %v983, 4294901760
    %v985 = vsub.f32 %v983, %v984
    %v986 = vand.u32 %v985, 4294901760
    %987 = vmatpush.msra.mxu0 %v986
    %v988 = vand.u32 %v890, 4294901760
    %v989 = vsub.f32 %v890, %v988
    %v990 = vand.u32 %v989, 4294901760
    %v991 = vsub.f32 %v989, %v990
    %v992 = vand.u32 %v991, 4294901760
    %993 = vmatpush.msra.mxu0 %v992
    %v994 = vand.u32 %v889, 4294901760
    %v995 = vsub.f32 %v889, %v994
    %v996 = vand.u32 %v995, 4294901760
    %v997 = vsub.f32 %v995, %v996
    %v998 = vand.u32 %v997, 4294901760
    %999 = vmatpush.msra.mxu0 %v998
    %v1000 = vand.u32 %v888, 4294901760
    %v1001 = vsub.f32 %v888, %v1000
    %v1002 = vand.u32 %v1001, 4294901760
    %v1003 = vsub.f32 %v1001, %v1002
    %v1004 = vand.u32 %v1003, 4294901760
    %1005 = vmatpush.msra.mxu0 %v1004
    %v1006 = vand.u32 %v887, 4294901760
    %v1007 = vsub.f32 %v887, %v1006
    %v1008 = vand.u32 %v1007, 4294901760
    %v1009 = vsub.f32 %v1007, %v1008
    %v1010 = vand.u32 %v1009, 4294901760
    %1011 = vmatpush.msra.mxu0 %v1010
    %v1012 = vand.u32 %v886, 4294901760
    %v1013 = vsub.f32 %v886, %v1012
    %v1014 = vand.u32 %v1013, 4294901760
    %v1015 = vsub.f32 %v1013, %v1014
    %v1016 = vand.u32 %v1015, 4294901760
    %1017 = vmatpush.msra.mxu0 %v1016
    %v1018 = vand.u32 %v885, 4294901760
    %v1019 = vsub.f32 %v885, %v1018
    %v1020 = vand.u32 %v1019, 4294901760
    %v1021 = vsub.f32 %v1019, %v1020
    %v1022 = vand.u32 %v1021, 4294901760
    %1023 = vmatpush.msra.mxu0 %v1022
    %v1024 = vand.u32 %v884, 4294901760
    %v1025 = vsub.f32 %v884, %v1024
    %v1026 = vand.u32 %v1025, 4294901760
    %v1027 = vsub.f32 %v1025, %v1026
    %v1028 = vand.u32 %v1027, 4294901760
    %1029 = vmatpush.msra.mxu0 %v1028
    %v1030 = vand.u32 %v883, 4294901760
    %v1031 = vsub.f32 %v883, %v1030
    %v1032 = vand.u32 %v1031, 4294901760
    %v1033 = vsub.f32 %v1031, %v1032
    %v1034 = vand.u32 %v1033, 4294901760
    %1035 = vmatpush.msra.mxu0 %v1034
    %v1036 = vand.u32 %v882, 4294901760
    %v1037 = vsub.f32 %v882, %v1036
    %v1038 = vand.u32 %v1037, 4294901760
    %v1039 = vsub.f32 %v1037, %v1038
    %v1040 = vand.u32 %v1039, 4294901760
    %1041 = vmatpush.msra.mxu0 %v1040
    %v1042 = vand.u32 %v881, 4294901760
    %v1043 = vsub.f32 %v881, %v1042
    %v1044 = vand.u32 %v1043, 4294901760
    %v1045 = vsub.f32 %v1043, %v1044
    %v1046 = vand.u32 %v1045, 4294901760
    %1047 = vmatpush.msra.mxu0 %v1046
    %v1048 = vand.u32 %v880, 4294901760
    %v1049 = vsub.f32 %v880, %v1048
    %v1050 = vand.u32 %v1049, 4294901760
    %v1051 = vsub.f32 %v1049, %v1050
    %v1052 = vand.u32 %v1051, 4294901760
    %1053 = vmatpush.msra.mxu0 %v1052
    %v1054 = vand.u32 %v879, 4294901760
    %v1055 = vsub.f32 %v879, %v1054
    %v1056 = vand.u32 %v1055, 4294901760
    %v1057 = vsub.f32 %v1055, %v1056
    %v1058 = vand.u32 %v1057, 4294901760
    %1059 = vmatpush.msra.mxu0 %v1058
    %v1060 = vand.u32 %v875, 4294901760
    %1061 = vmatmul.f32.gmra.mxu0 %v1060
    %v1062 = vpop.f32.mrf.mxu0
    %v1063 = vadd.f32 %v954, %v1062
    %v1064 = vand.u32 %v877, 4294901760
    %1065 = vmatmul.f32.gmra.mxu0 %v1064
    %v1066 = vpop.f32.mrf.mxu0
    %v1067 = vadd.f32 %v962, %v1066
    %1068 = vdwg.mxu0
    %v1069 = vand.u32 %v894, 4294901760
    %v1070 = vsub.f32 %v894, %v1069
    %1071 = vmatpush.msra.mxu0 %v1070
    %v1072 = vand.u32 %v893, 4294901760
    %v1073 = vsub.f32 %v893, %v1072
    %1074 = vmatpush.msra.mxu0 %v1073
    %v1075 = vand.u32 %v892, 4294901760
    %v1076 = vsub.f32 %v892, %v1075
    %1077 = vmatpush.msra.mxu0 %v1076
    %v1078 = vand.u32 %v891, 4294901760
    %v1079 = vsub.f32 %v891, %v1078
    %1080 = vmatpush.msra.mxu0 %v1079
    %v1081 = vand.u32 %v890, 4294901760
    %v1082 = vsub.f32 %v890, %v1081
    %1083 = vmatpush.msra.mxu0 %v1082
    %v1084 = vand.u32 %v889, 4294901760
    %v1085 = vsub.f32 %v889, %v1084
    %1086 = vmatpush.msra.mxu0 %v1085
    %v1087 = vand.u32 %v888, 4294901760
    %v1088 = vsub.f32 %v888, %v1087
    %1089 = vmatpush.msra.mxu0 %v1088
    %v1090 = vand.u32 %v887, 4294901760
    %v1091 = vsub.f32 %v887, %v1090
    %1092 = vmatpush.msra.mxu0 %v1091
    %v1093 = vand.u32 %v886, 4294901760
    %v1094 = vsub.f32 %v886, %v1093
    %1095 = vmatpush.msra.mxu0 %v1094
    %v1096 = vand.u32 %v885, 4294901760
    %v1097 = vsub.f32 %v885, %v1096
    %1098 = vmatpush.msra.mxu0 %v1097
    %v1099 = vand.u32 %v884, 4294901760
    %v1100 = vsub.f32 %v884, %v1099
    %1101 = vmatpush.msra.mxu0 %v1100
    %v1102 = vand.u32 %v883, 4294901760
    %v1103 = vsub.f32 %v883, %v1102
    %1104 = vmatpush.msra.mxu0 %v1103
    %v1105 = vand.u32 %v882, 4294901760
    %v1106 = vsub.f32 %v882, %v1105
    %1107 = vmatpush.msra.mxu0 %v1106
    %v1108 = vand.u32 %v881, 4294901760
    %v1109 = vsub.f32 %v881, %v1108
    %1110 = vmatpush.msra.mxu0 %v1109
    %v1111 = vand.u32 %v880, 4294901760
    %v1112 = vsub.f32 %v880, %v1111
    %1113 = vmatpush.msra.mxu0 %v1112
    %v1114 = vand.u32 %v879, 4294901760
    %v1115 = vsub.f32 %v879, %v1114
    %1116 = vmatpush.msra.mxu0 %v1115
    %v1117 = vand.u32 %v875, 4294901760
    %v1118 = vsub.f32 %v875, %v1117
    %1119 = vmatmul.f32.gmra.mxu0 %v1118
    %v1120 = vpop.f32.mrf.mxu0
    %v1121 = vadd.f32 %v1063, %v1120
    %v1122 = vand.u32 %v877, 4294901760
    %v1123 = vsub.f32 %v877, %v1122
    %1124 = vmatmul.f32.gmra.mxu0 %v1123
    %v1125 = vpop.f32.mrf.mxu0
    %v1126 = vadd.f32 %v1067, %v1125
    %1127 = vdwg.mxu0
    %v1128 = vand.u32 %v894, 4294901760
    %1129 = vmatpush.msra.mxu0 %v1128
    %v1130 = vand.u32 %v893, 4294901760
    %1131 = vmatpush.msra.mxu0 %v1130
    %v1132 = vand.u32 %v892, 4294901760
    %1133 = vmatpush.msra.mxu0 %v1132
    %v1134 = vand.u32 %v891, 4294901760
    %1135 = vmatpush.msra.mxu0 %v1134
    %v1136 = vand.u32 %v890, 4294901760
    %1137 = vmatpush.msra.mxu0 %v1136
    %v1138 = vand.u32 %v889, 4294901760
    %1139 = vmatpush.msra.mxu0 %v1138
    %v1140 = vand.u32 %v888, 4294901760
    %1141 = vmatpush.msra.mxu0 %v1140
    %v1142 = vand.u32 %v887, 4294901760
    %1143 = vmatpush.msra.mxu0 %v1142
    %v1144 = vand.u32 %v886, 4294901760
    %1145 = vmatpush.msra.mxu0 %v1144
    %v1146 = vand.u32 %v885, 4294901760
    %1147 = vmatpush.msra.mxu0 %v1146
    %v1148 = vand.u32 %v884, 4294901760
    %1149 = vmatpush.msra.mxu0 %v1148
    %v1150 = vand.u32 %v883, 4294901760
    %1151 = vmatpush.msra.mxu0 %v1150
    %v1152 = vand.u32 %v882, 4294901760
    %1153 = vmatpush.msra.mxu0 %v1152
    %v1154 = vand.u32 %v881, 4294901760
    %1155 = vmatpush.msra.mxu0 %v1154
    %v1156 = vand.u32 %v880, 4294901760
    %1157 = vmatpush.msra.mxu0 %v1156
    %v1158 = vand.u32 %v879, 4294901760
    %1159 = vmatpush.msra.mxu0 %v1158
    %v1160 = vand.u32 %v875, 4294901760
    %v1161 = vsub.f32 %v875, %v1160
    %v1162 = vand.u32 %v1161, 4294901760
    %1163 = vmatmul.f32.gmra.mxu0 %v1162
    %v1164 = vpop.f32.mrf.mxu0
    %v1165 = vadd.f32 %v1121, %v1164
    %v1166 = vand.u32 %v877, 4294901760
    %v1167 = vsub.f32 %v877, %v1166
    %v1168 = vand.u32 %v1167, 4294901760
    %1169 = vmatmul.f32.gmra.mxu0 %v1168
    %v1170 = vpop.f32.mrf.mxu0
    %v1171 = vadd.f32 %v1126, %v1170
    %1172 = vdwg.mxu0
    %v1173 = vand.u32 %v894, 4294901760
    %v1174 = vsub.f32 %v894, %v1173
    %v1175 = vand.u32 %v1174, 4294901760
    %1176 = vmatpush.msra.mxu0 %v1175
    %v1177 = vand.u32 %v893, 4294901760
    %v1178 = vsub.f32 %v893, %v1177
    %v1179 = vand.u32 %v1178, 4294901760
    %1180 = vmatpush.msra.mxu0 %v1179
    %v1181 = vand.u32 %v892, 4294901760
    %v1182 = vsub.f32 %v892, %v1181
    %v1183 = vand.u32 %v1182, 4294901760
    %1184 = vmatpush.msra.mxu0 %v1183
    %v1185 = vand.u32 %v891, 4294901760
    %v1186 = vsub.f32 %v891, %v1185
    %v1187 = vand.u32 %v1186, 4294901760
    %1188 = vmatpush.msra.mxu0 %v1187
    %v1189 = vand.u32 %v890, 4294901760
    %v1190 = vsub.f32 %v890, %v1189
    %v1191 = vand.u32 %v1190, 4294901760
    %1192 = vmatpush.msra.mxu0 %v1191
    %v1193 = vand.u32 %v889, 4294901760
    %v1194 = vsub.f32 %v889, %v1193
    %v1195 = vand.u32 %v1194, 4294901760
    %1196 = vmatpush.msra.mxu0 %v1195
    %v1197 = vand.u32 %v888, 4294901760
    %v1198 = vsub.f32 %v888, %v1197
    %v1199 = vand.u32 %v1198, 4294901760
    %1200 = vmatpush.msra.mxu0 %v1199
    %v1201 = vand.u32 %v887, 4294901760
    %v1202 = vsub.f32 %v887, %v1201
    %v1203 = vand.u32 %v1202, 4294901760
    %1204 = vmatpush.msra.mxu0 %v1203
    %v1205 = vand.u32 %v886, 4294901760
    %v1206 = vsub.f32 %v886, %v1205
    %v1207 = vand.u32 %v1206, 4294901760
    %1208 = vmatpush.msra.mxu0 %v1207
    %v1209 = vand.u32 %v885, 4294901760
    %v1210 = vsub.f32 %v885, %v1209
    %v1211 = vand.u32 %v1210, 4294901760
    %1212 = vmatpush.msra.mxu0 %v1211
    %v1213 = vand.u32 %v884, 4294901760
    %v1214 = vsub.f32 %v884, %v1213
    %v1215 = vand.u32 %v1214, 4294901760
    %1216 = vmatpush.msra.mxu0 %v1215
    %v1217 = vand.u32 %v883, 4294901760
    %v1218 = vsub.f32 %v883, %v1217
    %v1219 = vand.u32 %v1218, 4294901760
    %1220 = vmatpush.msra.mxu0 %v1219
    %v1221 = vand.u32 %v882, 4294901760
    %v1222 = vsub.f32 %v882, %v1221
    %v1223 = vand.u32 %v1222, 4294901760
    %1224 = vmatpush.msra.mxu0 %v1223
    %v1225 = vand.u32 %v881, 4294901760
    %v1226 = vsub.f32 %v881, %v1225
    %v1227 = vand.u32 %v1226, 4294901760
    %1228 = vmatpush.msra.mxu0 %v1227
    %v1229 = vand.u32 %v880, 4294901760
    %v1230 = vsub.f32 %v880, %v1229
    %v1231 = vand.u32 %v1230, 4294901760
    %1232 = vmatpush.msra.mxu0 %v1231
    %v1233 = vand.u32 %v879, 4294901760
    %v1234 = vsub.f32 %v879, %v1233
    %v1235 = vand.u32 %v1234, 4294901760
    %1236 = vmatpush.msra.mxu0 %v1235
    %v1237 = vand.u32 %v875, 4294901760
    %1238 = vmatmul.f32.gmra.mxu0 %v1237
    %v1239 = vpop.f32.mrf.mxu0
    %v1240 = vadd.f32 %v1165, %v1239
    %v1241 = vand.u32 %v877, 4294901760
    %1242 = vmatmul.f32.gmra.mxu0 %v1241
    %v1243 = vpop.f32.mrf.mxu0
    %v1244 = vadd.f32 %v1171, %v1243
    %1245 = vdwg.mxu0
    %v1246 = vand.u32 %v894, 4294901760
    %1247 = vmatpush.msra.mxu0 %v1246
    %v1248 = vand.u32 %v893, 4294901760
    %1249 = vmatpush.msra.mxu0 %v1248
    %v1250 = vand.u32 %v892, 4294901760
    %1251 = vmatpush.msra.mxu0 %v1250
    %v1252 = vand.u32 %v891, 4294901760
    %1253 = vmatpush.msra.mxu0 %v1252
    %v1254 = vand.u32 %v890, 4294901760
    %1255 = vmatpush.msra.mxu0 %v1254
    %v1256 = vand.u32 %v889, 4294901760
    %1257 = vmatpush.msra.mxu0 %v1256
    %v1258 = vand.u32 %v888, 4294901760
    %1259 = vmatpush.msra.mxu0 %v1258
    %v1260 = vand.u32 %v887, 4294901760
    %1261 = vmatpush.msra.mxu0 %v1260
    %v1262 = vand.u32 %v886, 4294901760
    %1263 = vmatpush.msra.mxu0 %v1262
    %v1264 = vand.u32 %v885, 4294901760
    %1265 = vmatpush.msra.mxu0 %v1264
    %v1266 = vand.u32 %v884, 4294901760
    %1267 = vmatpush.msra.mxu0 %v1266
    %v1268 = vand.u32 %v883, 4294901760
    %1269 = vmatpush.msra.mxu0 %v1268
    %v1270 = vand.u32 %v882, 4294901760
    %1271 = vmatpush.msra.mxu0 %v1270
    %v1272 = vand.u32 %v881, 4294901760
    %1273 = vmatpush.msra.mxu0 %v1272
    %v1274 = vand.u32 %v880, 4294901760
    %1275 = vmatpush.msra.mxu0 %v1274
    %v1276 = vand.u32 %v879, 4294901760
    %1277 = vmatpush.msra.mxu0 %v1276
    %v1278 = vand.u32 %v875, 4294901760
    %1279 = vmatmul.f32.gmra.mxu0 %v1278
    %v1280 = vpop.f32.mrf.mxu0
    %v1281 = vadd.f32 %v1240, %v1280
    %v1282 = vand.u32 %v877, 4294901760
    %1283 = vmatmul.f32.gmra.mxu0 %v1282
    %v1284 = vpop.f32.mrf.mxu0
    %v1285 = vadd.f32 %v1244, %v1284
    %1286 = vdwg.mxu0
    %v1287 = vand.u32 %v910, 4294901760
    %1288 = vmatpush.msra.mxu0 %v1287
    %v1289 = vand.u32 %v909, 4294901760
    %1290 = vmatpush.msra.mxu0 %v1289
    %v1291 = vand.u32 %v908, 4294901760
    %1292 = vmatpush.msra.mxu0 %v1291
    %v1293 = vand.u32 %v907, 4294901760
    %1294 = vmatpush.msra.mxu0 %v1293
    %v1295 = vand.u32 %v906, 4294901760
    %1296 = vmatpush.msra.mxu0 %v1295
    %v1297 = vand.u32 %v905, 4294901760
    %1298 = vmatpush.msra.mxu0 %v1297
    %v1299 = vand.u32 %v904, 4294901760
    %1300 = vmatpush.msra.mxu0 %v1299
    %v1301 = vand.u32 %v903, 4294901760
    %1302 = vmatpush.msra.mxu0 %v1301
    %v1303 = vand.u32 %v902, 4294901760
    %1304 = vmatpush.msra.mxu0 %v1303
    %v1305 = vand.u32 %v901, 4294901760
    %1306 = vmatpush.msra.mxu0 %v1305
    %v1307 = vand.u32 %v900, 4294901760
    %1308 = vmatpush.msra.mxu0 %v1307
    %v1309 = vand.u32 %v899, 4294901760
    %1310 = vmatpush.msra.mxu0 %v1309
    %v1311 = vand.u32 %v898, 4294901760
    %1312 = vmatpush.msra.mxu0 %v1311
    %v1313 = vand.u32 %v897, 4294901760
    %1314 = vmatpush.msra.mxu0 %v1313
    %v1315 = vand.u32 %v896, 4294901760
    %1316 = vmatpush.msra.mxu0 %v1315
    %v1317 = vand.u32 %v895, 4294901760
    %1318 = vmatpush.msra.mxu0 %v1317
    %v1319 = vand.u32 %v876, 4294901760
    %v1320 = vsub.f32 %v876, %v1319
    %v1321 = vand.u32 %v1320, 4294901760
    %v1322 = vsub.f32 %v1320, %v1321
    %v1323 = vand.u32 %v1322, 4294901760
    %1324 = vmatmul.f32.gmra.mxu0 %v1323
    %v1325 = vpop.f32.mrf.mxu0
    %v1326 = vadd.f32 %v1281, %v1325
    %v1327 = vand.u32 %v878, 4294901760
    %v1328 = vsub.f32 %v878, %v1327
    %v1329 = vand.u32 %v1328, 4294901760
    %v1330 = vsub.f32 %v1328, %v1329
    %v1331 = vand.u32 %v1330, 4294901760
    %1332 = vmatmul.f32.gmra.mxu0 %v1331
    %v1333 = vpop.f32.mrf.mxu0
    %v1334 = vadd.f32 %v1285, %v1333
    %1335 = vdwg.mxu0
    %v1336 = vand.u32 %v910, 4294901760
    %v1337 = vsub.f32 %v910, %v1336
    %v1338 = vand.u32 %v1337, 4294901760
    %v1339 = vsub.f32 %v1337, %v1338
    %v1340 = vand.u32 %v1339, 4294901760
    %1341 = vmatpush.msra.mxu0 %v1340
    %v1342 = vand.u32 %v909, 4294901760
    %v1343 = vsub.f32 %v909, %v1342
    %v1344 = vand.u32 %v1343, 4294901760
    %v1345 = vsub.f32 %v1343, %v1344
    %v1346 = vand.u32 %v1345, 4294901760
    %1347 = vmatpush.msra.mxu0 %v1346
    %v1348 = vand.u32 %v908, 4294901760
    %v1349 = vsub.f32 %v908, %v1348
    %v1350 = vand.u32 %v1349, 4294901760
    %v1351 = vsub.f32 %v1349, %v1350
    %v1352 = vand.u32 %v1351, 4294901760
    %1353 = vmatpush.msra.mxu0 %v1352
    %v1354 = vand.u32 %v907, 4294901760
    %v1355 = vsub.f32 %v907, %v1354
    %v1356 = vand.u32 %v1355, 4294901760
    %v1357 = vsub.f32 %v1355, %v1356
    %v1358 = vand.u32 %v1357, 4294901760
    %1359 = vmatpush.msra.mxu0 %v1358
    %v1360 = vand.u32 %v906, 4294901760
    %v1361 = vsub.f32 %v906, %v1360
    %v1362 = vand.u32 %v1361, 4294901760
    %v1363 = vsub.f32 %v1361, %v1362
    %v1364 = vand.u32 %v1363, 4294901760
    %1365 = vmatpush.msra.mxu0 %v1364
    %v1366 = vand.u32 %v905, 4294901760
    %v1367 = vsub.f32 %v905, %v1366
    %v1368 = vand.u32 %v1367, 4294901760
    %v1369 = vsub.f32 %v1367, %v1368
    %v1370 = vand.u32 %v1369, 4294901760
    %1371 = vmatpush.msra.mxu0 %v1370
    %v1372 = vand.u32 %v904, 4294901760
    %v1373 = vsub.f32 %v904, %v1372
    %v1374 = vand.u32 %v1373, 4294901760
    %v1375 = vsub.f32 %v1373, %v1374
    %v1376 = vand.u32 %v1375, 4294901760
    %1377 = vmatpush.msra.mxu0 %v1376
    %v1378 = vand.u32 %v903, 4294901760
    %v1379 = vsub.f32 %v903, %v1378
    %v1380 = vand.u32 %v1379, 4294901760
    %v1381 = vsub.f32 %v1379, %v1380
    %v1382 = vand.u32 %v1381, 4294901760
    %1383 = vmatpush.msra.mxu0 %v1382
    %v1384 = vand.u32 %v902, 4294901760
    %v1385 = vsub.f32 %v902, %v1384
    %v1386 = vand.u32 %v1385, 4294901760
    %v1387 = vsub.f32 %v1385, %v1386
    %v1388 = vand.u32 %v1387, 4294901760
    %1389 = vmatpush.msra.mxu0 %v1388
    %v1390 = vand.u32 %v901, 4294901760
    %v1391 = vsub.f32 %v901, %v1390
    %v1392 = vand.u32 %v1391, 4294901760
    %v1393 = vsub.f32 %v1391, %v1392
    %v1394 = vand.u32 %v1393, 4294901760
    %1395 = vmatpush.msra.mxu0 %v1394
    %v1396 = vand.u32 %v900, 4294901760
    %v1397 = vsub.f32 %v900, %v1396
    %v1398 = vand.u32 %v1397, 4294901760
    %v1399 = vsub.f32 %v1397, %v1398
    %v1400 = vand.u32 %v1399, 4294901760
    %1401 = vmatpush.msra.mxu0 %v1400
    %v1402 = vand.u32 %v899, 4294901760
    %v1403 = vsub.f32 %v899, %v1402
    %v1404 = vand.u32 %v1403, 4294901760
    %v1405 = vsub.f32 %v1403, %v1404
    %v1406 = vand.u32 %v1405, 4294901760
    %1407 = vmatpush.msra.mxu0 %v1406
    %v1408 = vand.u32 %v898, 4294901760
    %v1409 = vsub.f32 %v898, %v1408
    %v1410 = vand.u32 %v1409, 4294901760
    %v1411 = vsub.f32 %v1409, %v1410
    %v1412 = vand.u32 %v1411, 4294901760
    %1413 = vmatpush.msra.mxu0 %v1412
    %v1414 = vand.u32 %v897, 4294901760
    %v1415 = vsub.f32 %v897, %v1414
    %v1416 = vand.u32 %v1415, 4294901760
    %v1417 = vsub.f32 %v1415, %v1416
    %v1418 = vand.u32 %v1417, 4294901760
    %1419 = vmatpush.msra.mxu0 %v1418
    %v1420 = vand.u32 %v896, 4294901760
    %v1421 = vsub.f32 %v896, %v1420
    %v1422 = vand.u32 %v1421, 4294901760
    %v1423 = vsub.f32 %v1421, %v1422
    %v1424 = vand.u32 %v1423, 4294901760
    %1425 = vmatpush.msra.mxu0 %v1424
    %v1426 = vand.u32 %v895, 4294901760
    %v1427 = vsub.f32 %v895, %v1426
    %v1428 = vand.u32 %v1427, 4294901760
    %v1429 = vsub.f32 %v1427, %v1428
    %v1430 = vand.u32 %v1429, 4294901760
    %1431 = vmatpush.msra.mxu0 %v1430
    %v1432 = vand.u32 %v876, 4294901760
    %1433 = vmatmul.f32.gmra.mxu0 %v1432
    %v1434 = vpop.f32.mrf.mxu0
    %v1435 = vadd.f32 %v1326, %v1434
    %v1436 = vand.u32 %v878, 4294901760
    %1437 = vmatmul.f32.gmra.mxu0 %v1436
    %v1438 = vpop.f32.mrf.mxu0
    %v1439 = vadd.f32 %v1334, %v1438
    %1440 = vdwg.mxu0
    %v1441 = vand.u32 %v910, 4294901760
    %v1442 = vsub.f32 %v910, %v1441
    %1443 = vmatpush.msra.mxu0 %v1442
    %v1444 = vand.u32 %v909, 4294901760
    %v1445 = vsub.f32 %v909, %v1444
    %1446 = vmatpush.msra.mxu0 %v1445
    %v1447 = vand.u32 %v908, 4294901760
    %v1448 = vsub.f32 %v908, %v1447
    %1449 = vmatpush.msra.mxu0 %v1448
    %v1450 = vand.u32 %v907, 4294901760
    %v1451 = vsub.f32 %v907, %v1450
    %1452 = vmatpush.msra.mxu0 %v1451
    %v1453 = vand.u32 %v906, 4294901760
    %v1454 = vsub.f32 %v906, %v1453
    %1455 = vmatpush.msra.mxu0 %v1454
    %v1456 = vand.u32 %v905, 4294901760
    %v1457 = vsub.f32 %v905, %v1456
    %1458 = vmatpush.msra.mxu0 %v1457
    %v1459 = vand.u32 %v904, 4294901760
    %v1460 = vsub.f32 %v904, %v1459
    %1461 = vmatpush.msra.mxu0 %v1460
    %v1462 = vand.u32 %v903, 4294901760
    %v1463 = vsub.f32 %v903, %v1462
    %1464 = vmatpush.msra.mxu0 %v1463
    %v1465 = vand.u32 %v902, 4294901760
    %v1466 = vsub.f32 %v902, %v1465
    %1467 = vmatpush.msra.mxu0 %v1466
    %v1468 = vand.u32 %v901, 4294901760
    %v1469 = vsub.f32 %v901, %v1468
    %1470 = vmatpush.msra.mxu0 %v1469
    %v1471 = vand.u32 %v900, 4294901760
    %v1472 = vsub.f32 %v900, %v1471
    %1473 = vmatpush.msra.mxu0 %v1472
    %v1474 = vand.u32 %v899, 4294901760
    %v1475 = vsub.f32 %v899, %v1474
    %1476 = vmatpush.msra.mxu0 %v1475
    %v1477 = vand.u32 %v898, 4294901760
    %v1478 = vsub.f32 %v898, %v1477
    %1479 = vmatpush.msra.mxu0 %v1478
    %v1480 = vand.u32 %v897, 4294901760
    %v1481 = vsub.f32 %v897, %v1480
    %1482 = vmatpush.msra.mxu0 %v1481
    %v1483 = vand.u32 %v896, 4294901760
    %v1484 = vsub.f32 %v896, %v1483
    %1485 = vmatpush.msra.mxu0 %v1484
    %v1486 = vand.u32 %v895, 4294901760
    %v1487 = vsub.f32 %v895, %v1486
    %1488 = vmatpush.msra.mxu0 %v1487
    %v1489 = vand.u32 %v876, 4294901760
    %v1490 = vsub.f32 %v876, %v1489
    %1491 = vmatmul.f32.gmra.mxu0 %v1490
    %v1492 = vpop.f32.mrf.mxu0
    %v1493 = vadd.f32 %v1435, %v1492
    %v1494 = vand.u32 %v878, 4294901760
    %v1495 = vsub.f32 %v878, %v1494
    %1496 = vmatmul.f32.gmra.mxu0 %v1495
    %v1497 = vpop.f32.mrf.mxu0
    %v1498 = vadd.f32 %v1439, %v1497
    %1499 = vdwg.mxu0
    %v1500 = vand.u32 %v910, 4294901760
    %1501 = vmatpush.msra.mxu0 %v1500
    %v1502 = vand.u32 %v909, 4294901760
    %1503 = vmatpush.msra.mxu0 %v1502
    %v1504 = vand.u32 %v908, 4294901760
    %1505 = vmatpush.msra.mxu0 %v1504
    %v1506 = vand.u32 %v907, 4294901760
    %1507 = vmatpush.msra.mxu0 %v1506
    %v1508 = vand.u32 %v906, 4294901760
    %1509 = vmatpush.msra.mxu0 %v1508
    %v1510 = vand.u32 %v905, 4294901760
    %1511 = vmatpush.msra.mxu0 %v1510
    %v1512 = vand.u32 %v904, 4294901760
    %1513 = vmatpush.msra.mxu0 %v1512
    %v1514 = vand.u32 %v903, 4294901760
    %1515 = vmatpush.msra.mxu0 %v1514
    %v1516 = vand.u32 %v902, 4294901760
    %1517 = vmatpush.msra.mxu0 %v1516
    %v1518 = vand.u32 %v901, 4294901760
    %1519 = vmatpush.msra.mxu0 %v1518
    %v1520 = vand.u32 %v900, 4294901760
    %1521 = vmatpush.msra.mxu0 %v1520
    %v1522 = vand.u32 %v899, 4294901760
    %1523 = vmatpush.msra.mxu0 %v1522
    %v1524 = vand.u32 %v898, 4294901760
    %1525 = vmatpush.msra.mxu0 %v1524
    %v1526 = vand.u32 %v897, 4294901760
    %1527 = vmatpush.msra.mxu0 %v1526
    %v1528 = vand.u32 %v896, 4294901760
    %1529 = vmatpush.msra.mxu0 %v1528
    %v1530 = vand.u32 %v895, 4294901760
    %1531 = vmatpush.msra.mxu0 %v1530
    %v1532 = vand.u32 %v876, 4294901760
    %v1533 = vsub.f32 %v876, %v1532
    %v1534 = vand.u32 %v1533, 4294901760
    %1535 = vmatmul.f32.gmra.mxu0 %v1534
    %v1536 = vpop.f32.mrf.mxu0
    %v1537 = vadd.f32 %v1493, %v1536
    %v1538 = vand.u32 %v878, 4294901760
    %v1539 = vsub.f32 %v878, %v1538
    %v1540 = vand.u32 %v1539, 4294901760
    %1541 = vmatmul.f32.gmra.mxu0 %v1540
    %v1542 = vpop.f32.mrf.mxu0
    %v1543 = vadd.f32 %v1498, %v1542
    %1544 = vdwg.mxu0
    %v1545 = vand.u32 %v910, 4294901760
    %v1546 = vsub.f32 %v910, %v1545
    %v1547 = vand.u32 %v1546, 4294901760
    %1548 = vmatpush.msra.mxu0 %v1547
    %v1549 = vand.u32 %v909, 4294901760
    %v1550 = vsub.f32 %v909, %v1549
    %v1551 = vand.u32 %v1550, 4294901760
    %1552 = vmatpush.msra.mxu0 %v1551
    %v1553 = vand.u32 %v908, 4294901760
    %v1554 = vsub.f32 %v908, %v1553
    %v1555 = vand.u32 %v1554, 4294901760
    %1556 = vmatpush.msra.mxu0 %v1555
    %v1557 = vand.u32 %v907, 4294901760
    %v1558 = vsub.f32 %v907, %v1557
    %v1559 = vand.u32 %v1558, 4294901760
    %1560 = vmatpush.msra.mxu0 %v1559
    %v1561 = vand.u32 %v906, 4294901760
    %v1562 = vsub.f32 %v906, %v1561
    %v1563 = vand.u32 %v1562, 4294901760
    %1564 = vmatpush.msra.mxu0 %v1563
    %v1565 = vand.u32 %v905, 4294901760
    %v1566 = vsub.f32 %v905, %v1565
    %v1567 = vand.u32 %v1566, 4294901760
    %1568 = vmatpush.msra.mxu0 %v1567
    %v1569 = vand.u32 %v904, 4294901760
    %v1570 = vsub.f32 %v904, %v1569
    %v1571 = vand.u32 %v1570, 4294901760
    %1572 = vmatpush.msra.mxu0 %v1571
    %v1573 = vand.u32 %v903, 4294901760
    %v1574 = vsub.f32 %v903, %v1573
    %v1575 = vand.u32 %v1574, 4294901760
    %1576 = vmatpush.msra.mxu0 %v1575
    %v1577 = vand.u32 %v902, 4294901760
    %v1578 = vsub.f32 %v902, %v1577
    %v1579 = vand.u32 %v1578, 4294901760
    %1580 = vmatpush.msra.mxu0 %v1579
    %v1581 = vand.u32 %v901, 4294901760
    %v1582 = vsub.f32 %v901, %v1581
    %v1583 = vand.u32 %v1582, 4294901760
    %1584 = vmatpush.msra.mxu0 %v1583
    %v1585 = vand.u32 %v900, 4294901760
    %v1586 = vsub.f32 %v900, %v1585
    %v1587 = vand.u32 %v1586, 4294901760
    %1588 = vmatpush.msra.mxu0 %v1587
    %v1589 = vand.u32 %v899, 4294901760
    %v1590 = vsub.f32 %v899, %v1589
    %v1591 = vand.u32 %v1590, 4294901760
    %1592 = vmatpush.msra.mxu0 %v1591
    %v1593 = vand.u32 %v898, 4294901760
    %v1594 = vsub.f32 %v898, %v1593
    %v1595 = vand.u32 %v1594, 4294901760
    %1596 = vmatpush.msra.mxu0 %v1595
    %v1597 = vand.u32 %v897, 4294901760
    %v1598 = vsub.f32 %v897, %v1597
    %v1599 = vand.u32 %v1598, 4294901760
    %1600 = vmatpush.msra.mxu0 %v1599
    %v1601 = vand.u32 %v896, 4294901760
    %v1602 = vsub.f32 %v896, %v1601
    %v1603 = vand.u32 %v1602, 4294901760
    %1604 = vmatpush.msra.mxu0 %v1603
    %v1605 = vand.u32 %v895, 4294901760
    %v1606 = vsub.f32 %v895, %v1605
    %v1607 = vand.u32 %v1606, 4294901760
    %1608 = vmatpush.msra.mxu0 %v1607
    %v1609 = vand.u32 %v876, 4294901760
    %1610 = vmatmul.f32.gmra.mxu0 %v1609
    %v1611 = vpop.f32.mrf.mxu0
    %v1612 = vadd.f32 %v1537, %v1611
    %v1613 = vand.u32 %v878, 4294901760
    %1614 = vmatmul.f32.gmra.mxu0 %v1613
    %v1615 = vpop.f32.mrf.mxu0
    %v1616 = vadd.f32 %v1543, %v1615
    %1617 = vdwg.mxu0
    %v1618 = vand.u32 %v910, 4294901760
    %1619 = vmatpush.msra.mxu0 %v1618
    %v1620 = vand.u32 %v909, 4294901760
    %1621 = vmatpush.msra.mxu0 %v1620
    %v1622 = vand.u32 %v908, 4294901760
    %1623 = vmatpush.msra.mxu0 %v1622
    %v1624 = vand.u32 %v907, 4294901760
    %1625 = vmatpush.msra.mxu0 %v1624
    %v1626 = vand.u32 %v906, 4294901760
    %1627 = vmatpush.msra.mxu0 %v1626
    %v1628 = vand.u32 %v905, 4294901760
    %1629 = vmatpush.msra.mxu0 %v1628
    %v1630 = vand.u32 %v904, 4294901760
    %1631 = vmatpush.msra.mxu0 %v1630
    %v1632 = vand.u32 %v903, 4294901760
    %1633 = vmatpush.msra.mxu0 %v1632
    %v1634 = vand.u32 %v902, 4294901760
    %1635 = vmatpush.msra.mxu0 %v1634
    %v1636 = vand.u32 %v901, 4294901760
    %1637 = vmatpush.msra.mxu0 %v1636
    %v1638 = vand.u32 %v900, 4294901760
    %1639 = vmatpush.msra.mxu0 %v1638
    %v1640 = vand.u32 %v899, 4294901760
    %1641 = vmatpush.msra.mxu0 %v1640
    %v1642 = vand.u32 %v898, 4294901760
    %1643 = vmatpush.msra.mxu0 %v1642
    %v1644 = vand.u32 %v897, 4294901760
    %1645 = vmatpush.msra.mxu0 %v1644
    %v1646 = vand.u32 %v896, 4294901760
    %1647 = vmatpush.msra.mxu0 %v1646
    %v1648 = vand.u32 %v895, 4294901760
    %1649 = vmatpush.msra.mxu0 %v1648
    %v1650 = vand.u32 %v876, 4294901760
    %1651 = vmatmul.f32.gmra.mxu0 %v1650
    %v1652 = vpop.f32.mrf.mxu0
    %v1653 = vadd.f32 %v1612, %v1652
    %v1654 = vand.u32 %v878, 4294901760
    %1655 = vmatmul.f32.gmra.mxu0 %v1654
    %v1656 = vpop.f32.mrf.mxu0
    %v1657 = vadd.f32 %v1616, %v1656
    %1658 = vdwg.mxu0
    %v1659 = vld [vmem:[%s5] sm:$0x1]
    %v1660 = vld [vmem:[%s6] sm:$0x1]
    %v1661 = vld [vmem:[%s7] sm:$0x1]
    %v1662 = vadd.f32 %v91, %v1653
    %v1663 = vadd.f32 %v92, %v1657
    %1664 = vadd.xlane.f32.xlu0 %v1662
    %v1665 = vpop.xlane.xlu0 %1664
    %1666 = vadd.xlane.f32.xlu0 %v1663
    %v1667 = vpop.xlane.xlu0 %1666
    %v1668 = vmul.f32 %v1665, 0.03125
    %v1669 = vmul.f32 %v1667, 0.03125
    %v1670 = vsub.f32 %v1662, %v1668
    %v1671 = vsub.f32 %v1663, %v1669
    %v1673 = vperm.slane %v1661, 0
    %v1675 = vmul.f32 %v1670, %v1673
    %v1676 = vmul.f32 %v1671, %v1673
    %v1677 = vmul.f32 %v1675, %v1675
    %v1678 = vmul.f32 %v1676, %v1676
    %1679 = vadd.xlane.f32.xlu0 %v1677
    %v1680 = vpop.xlane.xlu0 %1679
    %1681 = vadd.xlane.f32.xlu0 %v1678
    %v1682 = vpop.xlane.xlu0 %1681
    %v1683 = vmul.f32 %v1680, 0.03125
    %v1684 = vmul.f32 %v1682, 0.03125
    %v1685 = vadd.f32 %v1683, 1e-05
    %v1686 = vadd.f32 %v1684, 1e-05
    %v1687 = vrsqrt.pop %v1685
    %v1688 = vmul.f32 %v1687, %v1685
    %v1689 = vmul.f32 %v1688, %v1687
    %v1690 = vmul.f32 0.5, %v1689
    %v1691 = vsub.f32 1.5, %v1690
    %v1692 = vmul.f32 %v1687, %v1691
    %vm1693 = vweird.f32 %v1685
    %vm1694 = vweird.f32 %v1687
    %vm1695 = vmor %vm1693, %vm1694
    %v1696 = vsel %vm1695, %v1687, %v1692
    %v1697 = vrsqrt.pop %v1686
    %v1698 = vmul.f32 %v1697, %v1686
    %v1699 = vmul.f32 %v1698, %v1697
    %v1700 = vmul.f32 0.5, %v1699
    %v1701 = vsub.f32 1.5, %v1700
    %v1702 = vmul.f32 %v1697, %v1701
    %vm1703 = vweird.f32 %v1686
    %vm1704 = vweird.f32 %v1697
    %vm1705 = vmor %vm1703, %vm1704
    %v1706 = vsel %vm1705, %v1697, %v1702
    %v1707 = vmul.f32 %v1675, %v1696
    %v1708 = vmul.f32 %v1676, %v1706
    %v1710 = vperm.slane %v1659, 0
    %v1712 = vmul.f32 %v1707, %v1710
    %v1713 = vmul.f32 %v1708, %v1710
    %v1715 = vperm.slane %v1660, 0
    %v1717 = vadd.f32 %v1712, %v1715
    %v1718 = vadd.f32 %v1713, %v1715
    %1719 = vst [vmem:[#allocation10] sm:$0xff] %v1717
    %1720 = vst [vmem:[#allocation10 + $0x8] sm:$0xff] %v1718
    // Predicated region
    $region50: #{tpu_custom_call.1} parent=1 // pred_check
      _
    $region51: #{tpu_custom_call.1} parent=1 // pred_check_branch
      %1722 = sbr.rel (0) target = $region53
    $region52: #{tpu_custom_call.1} parent=1 // pred_region
      %1724 = vsyncadd [#allocation4], 0
      %s1725 = sshll.u32 [#allocation10], 4
      %s1726 = int_to_ptr.vmem [resolvable:$true] %s1725
      %s1727 = sshll.u32 %s8, 4
      %s1728 = int_to_ptr.hbm [resolvable:$true] %s1727
      %1733 = dma.vmem_to_hbm [thread:$0]  %s1726, 256, %s1728, [#allocation4], 128, 128, 8
    $region53: #{tpu_custom_call.1} parent=1 // pred_fallthru
      _
    // Predicated region
    $region54: #{tpu_custom_call.1} parent=1 // pred_check
      _
    $region55: #{tpu_custom_call.1} parent=1 // pred_check_branch
      %1735 = sbr.rel (0) target = $region57
    $region56: #{tpu_custom_call.1} parent=1 // pred_region
      %1737 = dma.done [#allocation4], 256
    $region57: #{tpu_custom_call.1} parent=1 // pred_fallthru
      _
    %1738 = vsyncpa [#allocation3], 1
    %1739 = vsyncpa [#allocation6], 1
    %1740 = vsyncpa [#allocation9], 1
    %1741 = vsyncpa [#allocation4], 1

</llo_original>
